<compile_context>
chip_gen: v7x
topology: tpu7x:2x2x1
jax: 0.10.0
libtpu: 0.0.40
codegen_flags: <defaults>
</compile_context>

<pallas_src>
import functools
import numpy as np

import jax
import jax.numpy as jnp
from jax import lax
from jax.experimental import pallas as pl
from jax.experimental.pallas import tpu as pltpu

EPS = 1e-5            # nn.LayerNorm default eps
NEG_INF = -1e9        # cross-window entries: exp underflows to exactly 0


# ----------------------------- JAX glue helpers -----------------------------

def layernorm(x, gamma, beta):
    mu = jnp.mean(x, axis=-1, keepdims=True)
    var = jnp.mean((x - mu) ** 2, axis=-1, keepdims=True)
    return (x - mu) / jnp.sqrt(var + EPS) * gamma + beta


def window_partition_jnp(x, ws):
    B, H, W, C = x.shape
    x = x.reshape(B, H // ws, ws, W // ws, ws, C)
    return x.transpose(0, 1, 3, 2, 4, 5).reshape(-1, ws, ws, C)


def window_reverse_jnp(windows, ws, H, W):
    B = windows.shape[0] // (H * W // ws // ws)
    x = windows.reshape(B, H // ws, W // ws, ws, ws, -1)
    return x.transpose(0, 1, 3, 2, 4, 5).reshape(B, H, W, -1)


def window_partition_np(x, ws):
    B, H, W, C = x.shape
    x = x.reshape(B, H // ws, ws, W // ws, ws, C)
    return x.transpose(0, 1, 3, 2, 4, 5).reshape(-1, ws, ws, C)


def make_shift_region_ids(Hp, Wp, window_size, shift_size):
    """Swin img_mask region labels on the PADDED canvas: (Hp, Wp) float32.
    Two tokens in the same window attend iff their labels match (else -100)."""
    ids = np.zeros((Hp, Wp), dtype=np.float32)
    slices = (slice(0, -window_size), slice(-window_size, -shift_size),
              slice(-shift_size, None))
    cnt = 0
    for hs in slices:
        for ws_ in slices:
            ids[hs, ws_] = cnt
            cnt += 1
    return jnp.asarray(ids)


def make_attn_mask(Hp, Wp, window_size, shift_size):
    """(nW, N, N) -100/0 mask -- used only by the pure-JAX reference."""
    img_mask = np.zeros((1, Hp, Wp, 1), dtype=np.float32)
    slices = (slice(0, -window_size), slice(-window_size, -shift_size),
              slice(-shift_size, None))
    cnt = 0
    for hs in slices:
        for ws_ in slices:
            img_mask[:, hs, ws_, :] = cnt
            cnt += 1
    mw = window_partition_np(img_mask, window_size).reshape(
        -1, window_size * window_size)
    am = mw[:, None, :] - mw[:, :, None]
    am = np.where(am != 0, -100.0, 0.0).astype(np.float32)
    return jnp.asarray(am)


def make_relative_position_bias(table, window_size, num_heads):
    """table: ((2M-1)^2, nH) -> (nH, N, N), matching the PyTorch index math."""
    M = window_size
    coords = np.stack(np.meshgrid(np.arange(M), np.arange(M), indexing="ij"))
    coords_flatten = coords.reshape(2, -1)
    rel = coords_flatten[:, :, None] - coords_flatten[:, None, :]
    rel = rel.transpose(1, 2, 0).astype(np.int64)
    rel[:, :, 0] += M - 1
    rel[:, :, 1] += M - 1
    rel[:, :, 0] *= 2 * M - 1
    rpi = rel.sum(-1)                                  # (N, N)
    N = M * M
    bias = table[jnp.asarray(rpi.reshape(-1))].reshape(N, N, num_heads)
    return jnp.transpose(bias, (2, 0, 1)).astype(jnp.float32)   # (nH, N, N)


def make_block_bias(rel_bias, ws, k_win):
    """Block-diagonal additive bias for a block of k_win windows kept in the
    natural strip row order (row = r*k_win*ws + c):
        same window  -> relative-position bias
        cross window -> NEG_INF  (softmax weight underflows to exactly 0)
    Constant across grid steps -> DMA'd once, stays resident in VMEM."""
    nH, N, _ = rel_bias.shape
    kws = k_win * ws
    R = k_win * N
    idx = jnp.arange(R)
    r = idx // kws                       # spatial row within the block
    c = idx % kws                        # spatial col within the block
    w = c // ws                          # which window column
    n = r * ws + (c % ws)                # token index within its window
    same = (w[:, None] == w[None, :])
    gathered = rel_bias[:, n[:, None], n[None, :]]       # (nH, R, R)
    return jnp.where(same[None], gathered, jnp.float32(NEG_INF))


# ----------------------------- tiling heuristics -----------------------------

def _tpu_info():
    """(tensorcores per chip, physical VMEM bytes). Conservative fallbacks so a
    failed query can never produce an over-sized vmem_limit on v7x."""
    cores, vmem_cap = 1, 64 * 1024 * 1024
    try:
        info = pltpu.get_tpu_info()
        vmem_cap = int(getattr(info, "vmem_capacity_bytes", vmem_cap))
        for attr in ("num_tensorcores", "tensorcore_count", "num_cores",
                     "core_count"):
            v = getattr(info, attr, None)
            if v:
                cores = int(v)
                break
    except Exception:
        pass
    return max(1, cores), max(32 * 1024 * 1024, vmem_cap)


def _pick_windows_per_block(n_ww, ws, n_tok, num_cores, num_other_blocks):
    """Windows per attention block. Bigger blocks amortize the ~0.35us/step
    overhead and raise the matmul M; the block-diagonal masking makes the
    score/PV einsums grow by the same factor, so cap at ~256 rows. Prefer
    k*ws % 8 == 0 so the in-kernel (ws, k*ws, C) <-> (rows, C) reshapes are
    pure tile regroupings. Only force >= num_cores grid blocks on multi-TC
    chips (v7x); on v5e/v6e the grid is a serial loop."""
    target = max(1, 256 // n_tok)
    divs = [d for d in range(1, n_ww + 1) if n_ww % d == 0 and d <= target]
    good = [d for d in divs if (d * ws) % 8 == 0]
    cand = good or divs or [1]
    k = cand[-1]
    if num_cores > 1:
        while k > 1 and num_other_blocks * (n_ww // k) < num_cores:
            lower = [d for d in cand if d < k]
            if not lower:
                break
            k = lower[-1]
    return k


def _pick_row_tile(rows, num_cores):
    """MLP row tile: as big as reasonable (<=512); only keep >= num_cores grid
    blocks when the chip actually has more than one TensorCore."""
    tile = max(8, (min(512, rows) // 8) * 8)
    if num_cores > 1:
        while tile > 8 and pl.cdiv(rows, tile) < num_cores:
            tile = max(8, ((tile // 2) // 8) * 8)
    return tile


def _pick_hidden_tile(C, hidden, el_bytes, budget):
    """Largest divisor of `hidden` (multiple of 128 when possible) whose w1/w2
    slices fit the VMEM budget with double buffering; lets real-size MLP
    weights (C=1024, hidden=4096) fit v7x's 64 MiB without shrinking rows."""
    divs = [d for d in range(hidden, 0, -1) if hidden % d == 0]
    pref = ([d for d in divs if d % 128 == 0]
            or [d for d in divs if d % 8 == 0] or divs)
    for d in pref:
        if 4 * C * d * el_bytes <= budget:      # (C,d) + (d,C), x2 buffers
            return d
    return pref[-1]


# ----------------------------- Pallas kernels --------------------------------

def _window_attn_kernel(x_ref, g_ref, bln_ref, qkvw_ref, qkvb_ref,
                        projw_ref, projb_ref, bias_ref, *rest,
                        num_heads, head_dim, ws, kws, n_rows,
                        fuse_ln, has_mask, mm_dtype):
    """One block of k_win windows (a (ws, kws) spatial tile, gathered straight
    from the (B, Hp, Wp, C) array by the BlockSpec):
    (fused LN1) + QKV + block-diagonal MHA + softmax + single output proj.
    Token rows stay in strip order throughout; window structure lives entirely
    in the constant block-diagonal bias and the region-id mask."""
    o_ref = rest[-1]
    C = num_heads * head_dim
    R = n_rows                                  # ws * kws tokens in this block
    cast = lambda a: a.astype(mm_dtype)

    x = x_ref[0].reshape(R, C)                  # (ws, kws, C) -> rows (kws%8==0)
    if fuse_ln:
        # norm1 is per-token, so it commutes with roll / window tiling.
        mu = jnp.mean(x, axis=-1, keepdims=True)
        var = jnp.mean((x - mu) ** 2, axis=-1, keepdims=True)
        x = (x - mu) * lax.rsqrt(var + EPS) * g_ref[...] + bln_ref[...]

    qkv = jnp.dot(cast(x), cast(qkvw_ref[...]),
                  preferred_element_type=jnp.float32) + qkvb_ref[...]  # (R, 3C)

    # TODO(synk): with head_dim < 128 these per-head lane slices still cost a
    # relayout each; for real Swin (head_dim=32, C>=96) pre-permuting qkv_w to
    # 128-lane-aligned groups would remove most of it.
    def heads(base):
        return jnp.concatenate(
            [qkv[:, base + h * head_dim: base + (h + 1) * head_dim][None]
             for h in range(num_heads)], axis=0)             # (nH, R, hd)

    scale = head_dim ** -0.5
    q = heads(0) * scale
    k = heads(C)
    v = heads(2 * C)

    s = jnp.einsum("hnd,hmd->hnm", cast(q), cast(k),
                   preferred_element_type=jnp.float32)        # (nH, R, R)
    s = s + bias_ref[...]               # block-diag rel-pos bias / -1e9 cross
    if has_mask:
        idc = rest[0][0, 0]                                   # (R, 1)
        idr = rest[1][0, 0]                                   # (1, R)
        s = s + jnp.where(idc != idr, -100.0, 0.0)[None]      # Swin shift mask

    s = s - jnp.max(s, axis=-1, keepdims=True)
    p = jnp.exp(s)
    denom = jnp.sum(p, axis=-1, keepdims=True)
    r = pl.reciprocal(denom, approx=True)                     # EUP slot
    r = r * (2.0 - denom * r)                                 # 1 Newton step
    p = p * r

    ctx = jnp.einsum("hnm,hmd->hnd", cast(p), cast(v),
                     preferred_element_type=jnp.float32)      # (nH, R, hd)

    # Single output projection: one lane concat of the head slices, then one
    # (R, C) @ (C, C) MXU matmul (no K=head_dim loop, no VPU accumulation).
    ctx_rows = jnp.concatenate([ctx[h] for h in range(num_heads)], axis=-1)
    out = jnp.dot(cast(ctx_rows), cast(projw_ref[...]),
                  preferred_element_type=jnp.float32) + projb_ref[...]

    # Write straight back into the spatial (B, Hp, Wp, C) layout (fused
    # window_reverse).
    # TODO(synk): with C < 128 this store is still a masked vst; a lane-dense
    # (rows*C/128, 128) repack is left out to avoid the in-kernel relayout.
    o_ref[0] = out.reshape(ws, kws, C)


def _mlp_kernel(sc_ref, xo_ref, g_ref, b_ref, w1_ref, b1_ref, w2_ref, b2_ref,
                o_ref, ln_sc, acc_sc, *, mm_dtype):
    """Fused: residual1 + norm2 + fc1 + GELU + fc2 + residual2, with the MLP
    hidden dim as a reduction grid axis (k) so large weights can be tiled."""
    cast = lambda a: a.astype(mm_dtype)
    k = pl.program_id(1)

    @pl.when(k == 0)
    def _():
        x1 = sc_ref[...] + xo_ref[...]                        # residual 1
        mu = jnp.mean(x1, axis=-1, keepdims=True)
        var = jnp.mean((x1 - mu) ** 2, axis=-1, keepdims=True)
        ln_sc[...] = (x1 - mu) * lax.rsqrt(var + EPS) * g_ref[...] + b_ref[...]
        acc_sc[...] = jnp.zeros_like(acc_sc)

    h = jnp.dot(cast(ln_sc[...]), cast(w1_ref[...]),
                preferred_element_type=jnp.float32) + b1_ref[...]
    h = jax.nn.gelu(h, approximate=False)                     # exact GELU, f32
    acc_sc[...] += jnp.dot(cast(h), cast(w2_ref[...]),
                           preferred_element_type=jnp.float32)

    @pl.when(k == pl.num_programs(1) - 1)
    def _():
        o_ref[...] = sc_ref[...] + xo_ref[...] + acc_sc[...] + b2_ref[...]


# ----------------------------- kernel wrappers --------------------------------

def window_attention(xs, gamma1, beta1, qkv_w, qkv_b, proj_w, proj_b,
                     bias_bd, ids_col, ids_row, ws, k_win, num_heads,
                     fuse_ln, matmul_dtype, vmem_limit):
    """xs: (B, Hp, Wp, C) spatial (already shifted) -> (B, Hp, Wp, C) out.
    The BlockSpec gathers k_win windows per grid step directly from the
    spatial array (window partition/reverse fused into the DMA)."""
    B, Hp, Wp, C = xs.shape
    head_dim = C // num_heads
    kws = k_win * ws
    R = ws * kws
    n_wh = Hp // ws
    n_j = Wp // kws
    has_mask = ids_col is not None

    if matmul_dtype != jnp.float32:      # halve weight DMA bytes (all gens)
        qkv_w = qkv_w.astype(matmul_dtype)
        proj_w = proj_w.astype(matmul_dtype)

    kernel = functools.partial(
        _window_attn_kernel, num_heads=num_heads, head_dim=head_dim,
        ws=ws, kws=kws, n_rows=R, fuse_ln=fuse_ln, has_mask=has_mask,
        mm_dtype=matmul_dtype)

    # TODO(synk): on v7x the constant weight specs below would benefit from
    # pipeline_mode=pl.Buffered(1) (single-buffered) to halve their VMEM.
    in_specs = [
        pl.BlockSpec((1, ws, kws, C), lambda b, i, j: (b, i, j, 0)),
        pl.BlockSpec((1, C), lambda b, i, j: (0, 0)),
        pl.BlockSpec((1, C), lambda b, i, j: (0, 0)),
        pl.BlockSpec((C, 3 * C), lambda b, i, j: (0, 0)),
        pl.BlockSpec((1, 3 * C), lambda b, i, j: (0, 0)),
        pl.BlockSpec((C, C), lambda b, i, j: (0, 0)),
        pl.BlockSpec((1, C), lambda b, i, j: (0, 0)),
        pl.BlockSpec((num_heads, R, R), lambda b, i, j: (0, 0, 0)),
    ]
    args = [xs, gamma1.reshape(1, C), beta1.reshape(1, C),
            qkv_w, qkv_b.reshape(1, 3 * C), proj_w, proj_b.reshape(1, C),
            bias_bd]
    if has_mask:
        # Shift mask rebuilt in-kernel from tiny per-block region-id vectors,
        # indexed only by (window-row, window-col-block): no per-batch tiling.
        in_specs += [
            pl.BlockSpec((1, 1, R, 1), lambda b, i, j: (i, j, 0, 0)),
            pl.BlockSpec((1, 1, 1, R), lambda b, i, j: (i, j, 0, 0)),
        ]
        args += [ids_col, ids_row]

    return pl.pallas_call(
        kernel,
        out_shape=jax.ShapeDtypeStruct((B, Hp, Wp, C), jnp.float32),
        grid_spec=pltpu.PrefetchScalarGridSpec(
            num_scalar_prefetch=0,
            grid=(B, n_wh, n_j),
            in_specs=in_specs,
            out_specs=pl.BlockSpec((1, ws, kws, C), lambda b, i, j: (b, i, j, 0)),
        ),
        compiler_params=pltpu.CompilerParams(
            dimension_semantics=("parallel", "parallel", "parallel"),
            vmem_limit_bytes=vmem_limit),
    )(*args)


def mlp_block(shortcut, xo, gamma2, beta2, w1, b1, w2, b2, matmul_dtype,
              num_cores, vmem_limit):
    """shortcut, xo: (R, C) -> fused residual + LN2 + MLP + residual -> (R, C).
    Grid: (row tiles [parallel], hidden tiles [arbitrary reduction])."""
    R, C = shortcut.shape
    hidden = w1.shape[1]
    tile = _pick_row_tile(R, num_cores)
    el = 2 if matmul_dtype != jnp.float32 else 4
    ht = _pick_hidden_tile(C, hidden, el, vmem_limit // 4)
    n_h = hidden // ht

    if matmul_dtype != jnp.float32:
        w1 = w1.astype(matmul_dtype)
        w2 = w2.astype(matmul_dtype)

    kernel = functools.partial(_mlp_kernel, mm_dtype=matmul_dtype)
    return pl.pallas_call(
        kernel,
        out_shape=jax.ShapeDtypeStruct((R, C), jnp.float32),
        grid_spec=pltpu.PrefetchScalarGridSpec(
            num_scalar_prefetch=0,
            grid=(pl.cdiv(R, tile), n_h),      # masked tail rows are discarded
            in_specs=[
                pl.BlockSpec((tile, C), lambda i, k: (i, 0)),
                pl.BlockSpec((tile, C), lambda i, k: (i, 0)),
                pl.BlockSpec((1, C), lambda i, k: (0, 0)),
                pl.BlockSpec((1, C), lambda i, k: (0, 0)),
                pl.BlockSpec((C, ht), lambda i, k: (0, k)),
                pl.BlockSpec((1, ht), lambda i, k: (0, k)),
                pl.BlockSpec((ht, C), lambda i, k: (k, 0)),
                pl.BlockSpec((1, C), lambda i, k: (0, 0)),
            ],
            out_specs=pl.BlockSpec((tile, C), lambda i, k: (i, 0)),
            scratch_shapes=[pltpu.VMEM((tile, C), jnp.float32),
                            pltpu.VMEM((tile, C), jnp.float32)],
        ),
        compiler_params=pltpu.CompilerParams(
            dimension_semantics=("parallel", "arbitrary"),
            vmem_limit_bytes=vmem_limit),
    )(shortcut, xo, gamma2.reshape(1, C), beta2.reshape(1, C),
      w1, b1.reshape(1, hidden), w2, b2.reshape(1, C))


# ---------------------------- full block forward -----------------------------

def swin_block_pallas(x, params, rel_bias, H, W, window_size, shift_size,
                      num_heads, matmul_dtype=jnp.float32):
    B, L, C = x.shape
    assert L == H * W
    ws = window_size
    N = ws * ws

    num_cores, vmem_cap = _tpu_info()
    vmem_limit = int(min(96 * 1024 * 1024, vmem_cap * 3 // 4))

    pad_r = (ws - W % ws) % ws
    pad_b = (ws - H % ws) % ws
    Hp, Wp = H + pad_b, W + pad_r
    n_wh, n_ww = Hp // ws, Wp // ws
    fuse_ln = (pad_r == 0 and pad_b == 0)

    k_win = _pick_windows_per_block(n_ww, ws, N, num_cores, B * n_wh)
    kws = k_win * ws
    R = k_win * N
    n_j = Wp // kws

    shortcut = x
    if fuse_ln:
        xs = x.reshape(B, H, W, C)       # norm1 fused into the attention kernel
    else:
        # TODO(synk): with spatial padding, norm1 stays outside the kernel so
        # the padded tokens remain exactly zero (same op order as PyTorch).
        xs = layernorm(x, params["g1"], params["b1_ln"]).reshape(B, H, W, C)
        xs = jnp.pad(xs, ((0, 0), (0, pad_b), (0, pad_r), (0, 0)))

    if shift_size > 0:
        xs = jnp.roll(xs, (-shift_size, -shift_size), axis=(1, 2))
        ids = make_shift_region_ids(Hp, Wp, ws, shift_size)        # (Hp, Wp)
        ids_b = ids.reshape(n_wh, ws, n_j, kws)
        ids_b = ids_b.transpose(0, 2, 1, 3).reshape(n_wh, n_j, R)  # strip order
        ids_row = ids_b[:, :, None, :]                             # (n_wh,n_j,1,R)
        ids_col = ids_b[:, :, :, None]                             # (n_wh,n_j,R,1)
    else:
        ids_row = ids_col = None                                   # no-mask path

    bias_bd = make_block_bias(rel_bias, ws, k_win)                 # (nH, R, R)

    att = window_attention(xs, params["g1"], params["b1_ln"],
                           params["qkv_w"], params["qkv_b"],
                           params["proj_w"], params["proj_b"],
                           bias_bd, ids_col, ids_row,
                           ws, k_win, num_heads, fuse_ln, matmul_dtype,
                           vmem_limit)                             # (B,Hp,Wp,C)

    if shift_size > 0:
        att = jnp.roll(att, (shift_size, shift_size), axis=(1, 2))
    xo = att[:, :H, :W, :].reshape(B * L, C)
    # TODO(synk): for the no-shift/no-pad case the reverse roll / crop could be
    # folded into the MLP kernel's input BlockSpec as well; kept in XLA here.

    # residual1 + norm2 + MLP + residual2 fused in one kernel (drop_path = id)
    out = mlp_block(shortcut.reshape(B * L, C), xo,
                    params["g2"], params["b2_ln"],
                    params["w1"], params["b1"], params["w2"], params["b2"],
                    matmul_dtype, num_cores, vmem_limit)
    return out.reshape(B, L, C)


# ----------------------------- pure-JAX reference ----------------------------

def swin_block_ref(x, params, rel_bias, H, W, window_size, shift_size, num_heads):
    B, L, C = x.shape
    ws = window_size
    N = ws * ws
    hd = C // num_heads

    shortcut = x
    xn = layernorm(x, params["g1"], params["b1_ln"]).reshape(B, H, W, C)
    pad_r = (ws - W % ws) % ws
    pad_b = (ws - H % ws) % ws
    if pad_r > 0 or pad_b > 0:
        xn = jnp.pad(xn, ((0, 0), (0, pad_b), (0, pad_r), (0, 0)))
    Hp, Wp = H + pad_b, W + pad_r
    nW = (Hp // ws) * (Wp // ws)
    if shift_size > 0:
        shifted = jnp.roll(xn, (-shift_size, -shift_size), axis=(1, 2))
        mask = make_attn_mask(Hp, Wp, ws, shift_size)
    else:
        shifted = xn
        mask = None

    xw = window_partition_jnp(shifted, ws).reshape(-1, N, C)          # (B_, N, C)
    qkv = xw @ params["qkv_w"] + params["qkv_b"]
    qkv = qkv.reshape(-1, N, 3, num_heads, hd).transpose(2, 0, 3, 1, 4)
    q, k, v = qkv[0], qkv[1], qkv[2]
    q = q * (hd ** -0.5)
    attn = jnp.einsum("bhnd,bhmd->bhnm", q, k)
    attn = attn + rel_bias[None]
    if mask is not None:
        attn = attn.reshape(B, nW, num_heads, N, N) + mask[None, :, None]
        attn = attn.reshape(-1, num_heads, N, N)
    attn = jax.nn.softmax(attn, axis=-1)
    out = jnp.einsum("bhnm,bhmd->bhnd", attn, v).transpose(0, 2, 1, 3)
    out = out.reshape(-1, N, C) @ params["proj_w"] + params["proj_b"]
    out = out.reshape(-1, ws, ws, C)
    shifted = window_reverse_jnp(out, ws, Hp, Wp)
    if shift_size > 0:
        xo = jnp.roll(shifted, (shift_size, shift_size), axis=(1, 2))
    else:
        xo = shifted
    xo = xo[:, :H, :W, :].reshape(B, H * W, C)
    x1 = shortcut + xo
    ln2 = layernorm(x1, params["g2"], params["b2_ln"])
    h = jax.nn.gelu(ln2 @ params["w1"] + params["b1"], approximate=False)
    return x1 + (h @ params["w2"] + params["b2"])


# ----------------------------------- main ------------------------------------

if __name__ == "__main__":
    # config (small but faithful to the module): dim=32, 4 heads, window=4
    C, num_heads, window_size = 32, 4, 4
    mlp_ratio = 4.0
    hidden = int(C * mlp_ratio)
    M = window_size

    key = jax.random.PRNGKey(0)
    ks = jax.random.split(key, 16)
    params = {
        "g1":    1.0 + 0.1 * jax.random.normal(ks[0], (C,), jnp.float32),
        "b1_ln": 0.1 * jax.random.normal(ks[1], (C,), jnp.float32),
        "qkv_w": 0.05 * jax.random.normal(ks[2], (C, 3 * C), jnp.float32),
        "qkv_b": 0.05 * jax.random.normal(ks[3], (3 * C,), jnp.float32),
        "proj_w": 0.05 * jax.random.normal(ks[4], (C, C), jnp.float32),
        "proj_b": 0.05 * jax.random.normal(ks[5], (C,), jnp.float32),
        "rel_table": 0.02 * jax.random.normal(
            ks[6], ((2 * M - 1) * (2 * M - 1), num_heads), jnp.float32),
        "g2":    1.0 + 0.1 * jax.random.normal(ks[7], (C,), jnp.float32),
        "b2_ln": 0.1 * jax.random.normal(ks[8], (C,), jnp.float32),
        "w1": 0.05 * jax.random.normal(ks[9], (C, hidden), jnp.float32),
        "b1": 0.05 * jax.random.normal(ks[10], (hidden,), jnp.float32),
        "w2": 0.05 * jax.random.normal(ks[11], (hidden, C), jnp.float32),
        "b2": 0.05 * jax.random.normal(ks[12], (C,), jnp.float32),
    }
    rel_bias = make_relative_position_bias(params["rel_table"], M, num_heads)

    # (tag, B, H, W, shift_size, matmul dtype, tolerance)
    cases = [
        ("shifted   f32 ", 2, 8, 8, 2, jnp.float32, 2e-3),
        ("no-shift  f32 ", 2, 8, 8, 0, jnp.float32, 2e-3),
        ("padded    f32 ", 2, 6, 6, 2, jnp.float32, 2e-3),
        ("shifted   bf16", 2, 8, 8, 2, jnp.bfloat16, 5e-2),
    ]

    for i, (tag, B, H, W, shift_size, mm_dtype, tol) in enumerate(cases):
        xk = jax.random.fold_in(ks[13], i)
        x = jax.random.normal(xk, (B, H * W, C), jnp.float32)

        out = swin_block_pallas(x, params, rel_bias, H, W, window_size,
                                shift_size, num_heads, matmul_dtype=mm_dtype)
        out = jax.block_until_ready(out)

        ref = swin_block_ref(x, params, rel_bias, H, W, window_size,
                             shift_size, num_heads)
        ref = jax.block_until_ready(ref)

        assert out.shape == (B, H * W, C)
        np.testing.assert_allclose(np.asarray(out), np.asarray(ref),
                                   rtol=tol, atol=tol)

    print("KERNEL_OK")
</pallas_src>

<mosaic_0001>
module attributes {stable_mosaic.version = 11 : i64} {
  func.func @_window_attn_kernel(%arg0: i32, %arg1: i32, %arg2: i32, %arg3: memref<1x4x8x32xf32, #tpu.memory_space<vmem>>, %arg4: memref<1x32xf32, #tpu.memory_space<vmem>>, %arg5: memref<1x32xf32, #tpu.memory_space<vmem>>, %arg6: memref<32x96xf32, #tpu.memory_space<vmem>>, %arg7: memref<1x96xf32, #tpu.memory_space<vmem>>, %arg8: memref<32x32xf32, #tpu.memory_space<vmem>>, %arg9: memref<1x32xf32, #tpu.memory_space<vmem>>, %arg10: memref<4x32x32xf32, #tpu.memory_space<vmem>>, %arg11: memref<1x1x32x1xf32, #tpu.memory_space<vmem>>, %arg12: memref<1x1x1x32xf32, #tpu.memory_space<vmem>>, %arg13: memref<1x4x8x32xf32, #tpu.memory_space<vmem>>) attributes {dimension_semantics = [#tpu.dimension_semantics<parallel>, #tpu.dimension_semantics<parallel>, #tpu.dimension_semantics<parallel>], iteration_bounds = array<i64: 2, 2, 1>, scalar_prefetch = 0 : i64, scratch_operands = 0 : i64, tpu.core_type = #tpu.core_type<tc>, window_params = [{transform_indices = @transform_0, window_bounds = array<i64: 1, 4, 8, 32>}, {pipeline_mode = #tpu.pipeline_mode<synchronous>, transform_indices = @transform_1, window_bounds = array<i64: 1, 32>}, {pipeline_mode = #tpu.pipeline_mode<synchronous>, transform_indices = @transform_2, window_bounds = array<i64: 1, 32>}, {pipeline_mode = #tpu.pipeline_mode<synchronous>, transform_indices = @transform_3, window_bounds = array<i64: 32, 96>}, {pipeline_mode = #tpu.pipeline_mode<synchronous>, transform_indices = @transform_4, window_bounds = array<i64: 1, 96>}, {pipeline_mode = #tpu.pipeline_mode<synchronous>, transform_indices = @transform_5, window_bounds = array<i64: 32, 32>}, {pipeline_mode = #tpu.pipeline_mode<synchronous>, transform_indices = @transform_6, window_bounds = array<i64: 1, 32>}, {pipeline_mode = #tpu.pipeline_mode<synchronous>, transform_indices = @transform_7, window_bounds = array<i64: 4, 32, 32>}, {transform_indices = @transform_8, window_bounds = array<i64: 1, 1, 32, 1>}, {transform_indices = @transform_9, window_bounds = array<i64: 1, 1, 1, 32>}, {transform_indices = @transform_10, window_bounds = array<i64: 1, 4, 8, 32>}]} {
    %c0 = arith.constant 0 : index
    %c0_0 = arith.constant 0 : index
    %c0_1 = arith.constant 0 : index
    %c0_2 = arith.constant 0 : index
    %0 = vector.load %arg3[%c0, %c0_0, %c0_1, %c0_2] : memref<1x4x8x32xf32, #tpu.memory_space<vmem>>, vector<1x4x8x32xf32>
    %1 = vector.shape_cast %0 : vector<1x4x8x32xf32> to vector<4x8x32xf32>
    %2 = vector.shape_cast %1 : vector<4x8x32xf32> to vector<32x32xf32>
    %cst = arith.constant dense<0.000000e+00> : vector<32xf32>
    %3 = vector.multi_reduction <add>, %2, %cst [1] : vector<32x32xf32> to vector<32xf32>
    %4 = vector.shape_cast %3 : vector<32xf32> to vector<32x1xf32>
    %cst_3 = arith.constant 3.200000e+01 : f32
    %5 = vector.broadcast %cst_3 : f32 to vector<32x1xf32>
    %6 = arith.divf %4, %5 : vector<32x1xf32>
    %7 = vector.broadcast %6 : vector<32x1xf32> to vector<32x32xf32>
    %8 = arith.subf %2, %7 : vector<32x32xf32>
    %9 = arith.mulf %8, %8 : vector<32x32xf32>
    %cst_4 = arith.constant dense<0.000000e+00> : vector<32xf32>
    %10 = vector.multi_reduction <add>, %9, %cst_4 [1] : vector<32x32xf32> to vector<32xf32>
    %11 = vector.shape_cast %10 : vector<32xf32> to vector<32x1xf32>
    %cst_5 = arith.constant 3.200000e+01 : f32
    %12 = vector.broadcast %cst_5 : f32 to vector<32x1xf32>
    %13 = arith.divf %11, %12 : vector<32x1xf32>
    %14 = vector.broadcast %6 : vector<32x1xf32> to vector<32x32xf32>
    %15 = arith.subf %2, %14 : vector<32x32xf32>
    %cst_6 = arith.constant 9.99999974E-6 : f32
    %16 = vector.broadcast %cst_6 : f32 to vector<32x1xf32>
    %17 = arith.addf %13, %16 : vector<32x1xf32>
    %18 = math.rsqrt %17 : vector<32x1xf32>
    %19 = vector.broadcast %18 : vector<32x1xf32> to vector<32x32xf32>
    %20 = arith.mulf %15, %19 : vector<32x32xf32>
    %c0_7 = arith.constant 0 : index
    %c0_8 = arith.constant 0 : index
    %21 = vector.load %arg4[%c0_7, %c0_8] : memref<1x32xf32, #tpu.memory_space<vmem>>, vector<1x32xf32>
    %22 = vector.broadcast %21 : vector<1x32xf32> to vector<32x32xf32>
    %23 = arith.mulf %20, %22 : vector<32x32xf32>
    %c0_9 = arith.constant 0 : index
    %c0_10 = arith.constant 0 : index
    %24 = vector.load %arg5[%c0_9, %c0_10] : memref<1x32xf32, #tpu.memory_space<vmem>>, vector<1x32xf32>
    %25 = vector.broadcast %24 : vector<1x32xf32> to vector<32x32xf32>
    %26 = arith.addf %23, %25 : vector<32x32xf32>
    %c0_11 = arith.constant 0 : index
    %c0_12 = arith.constant 0 : index
    %27 = vector.load %arg6[%c0_11, %c0_12] : memref<32x96xf32, #tpu.memory_space<vmem>>, vector<32x96xf32>
    %cst_13 = arith.constant dense<0.000000e+00> : vector<32x96xf32>
    %28 = tpu.matmul %26, %27, %cst_13 {dimension_numbers = #tpu.dot_dimension_numbers<[1], [0], [0], [1], [0, 0, 1, 1], [], []>} : vector<32x32xf32>, vector<32x96xf32>, vector<32x96xf32> -> vector<32x96xf32>
    %c0_14 = arith.constant 0 : index
    %c0_15 = arith.constant 0 : index
    %29 = vector.load %arg7[%c0_14, %c0_15] : memref<1x96xf32, #tpu.memory_space<vmem>>, vector<1x96xf32>
    %30 = vector.broadcast %29 : vector<1x96xf32> to vector<32x96xf32>
    %31 = arith.addf %28, %30 : vector<32x96xf32>
    %32 = vector.extract_strided_slice %31 {offsets = [0, 0], sizes = [32, 8], strides = [1, 1]} : vector<32x96xf32> to vector<32x8xf32>
    %33 = vector.shape_cast %32 : vector<32x8xf32> to vector<1x32x8xf32>
    %34 = vector.extract_strided_slice %31 {offsets = [0, 8], sizes = [32, 8], strides = [1, 1]} : vector<32x96xf32> to vector<32x8xf32>
    %35 = vector.shape_cast %34 : vector<32x8xf32> to vector<1x32x8xf32>
    %36 = vector.extract_strided_slice %31 {offsets = [0, 16], sizes = [32, 8], strides = [1, 1]} : vector<32x96xf32> to vector<32x8xf32>
    %37 = vector.shape_cast %36 : vector<32x8xf32> to vector<1x32x8xf32>
    %38 = vector.extract_strided_slice %31 {offsets = [0, 24], sizes = [32, 8], strides = [1, 1]} : vector<32x96xf32> to vector<32x8xf32>
    %39 = vector.shape_cast %38 : vector<32x8xf32> to vector<1x32x8xf32>
    %40 = tpu.concatenate %33, %35, %37, %39 in 0 : vector<1x32x8xf32>, vector<1x32x8xf32>, vector<1x32x8xf32>, vector<1x32x8xf32> -> vector<4x32x8xf32>
    %cst_16 = arith.constant 0.353553385 : f32
    %41 = vector.broadcast %cst_16 : f32 to vector<4x32x8xf32>
    %42 = arith.mulf %40, %41 : vector<4x32x8xf32>
    %43 = vector.extract_strided_slice %31 {offsets = [0, 32], sizes = [32, 8], strides = [1, 1]} : vector<32x96xf32> to vector<32x8xf32>
    %44 = vector.shape_cast %43 : vector<32x8xf32> to vector<1x32x8xf32>
    %45 = vector.extract_strided_slice %31 {offsets = [0, 40], sizes = [32, 8], strides = [1, 1]} : vector<32x96xf32> to vector<32x8xf32>
    %46 = vector.shape_cast %45 : vector<32x8xf32> to vector<1x32x8xf32>
    %47 = vector.extract_strided_slice %31 {offsets = [0, 48], sizes = [32, 8], strides = [1, 1]} : vector<32x96xf32> to vector<32x8xf32>
    %48 = vector.shape_cast %47 : vector<32x8xf32> to vector<1x32x8xf32>
    %49 = vector.extract_strided_slice %31 {offsets = [0, 56], sizes = [32, 8], strides = [1, 1]} : vector<32x96xf32> to vector<32x8xf32>
    %50 = vector.shape_cast %49 : vector<32x8xf32> to vector<1x32x8xf32>
    %51 = tpu.concatenate %44, %46, %48, %50 in 0 : vector<1x32x8xf32>, vector<1x32x8xf32>, vector<1x32x8xf32>, vector<1x32x8xf32> -> vector<4x32x8xf32>
    %52 = vector.extract_strided_slice %31 {offsets = [0, 64], sizes = [32, 8], strides = [1, 1]} : vector<32x96xf32> to vector<32x8xf32>
    %53 = vector.shape_cast %52 : vector<32x8xf32> to vector<1x32x8xf32>
    %54 = vector.extract_strided_slice %31 {offsets = [0, 72], sizes = [32, 8], strides = [1, 1]} : vector<32x96xf32> to vector<32x8xf32>
    %55 = vector.shape_cast %54 : vector<32x8xf32> to vector<1x32x8xf32>
    %56 = vector.extract_strided_slice %31 {offsets = [0, 80], sizes = [32, 8], strides = [1, 1]} : vector<32x96xf32> to vector<32x8xf32>
    %57 = vector.shape_cast %56 : vector<32x8xf32> to vector<1x32x8xf32>
    %58 = vector.extract_strided_slice %31 {offsets = [0, 88], sizes = [32, 8], strides = [1, 1]} : vector<32x96xf32> to vector<32x8xf32>
    %59 = vector.shape_cast %58 : vector<32x8xf32> to vector<1x32x8xf32>
    %60 = tpu.concatenate %53, %55, %57, %59 in 0 : vector<1x32x8xf32>, vector<1x32x8xf32>, vector<1x32x8xf32>, vector<1x32x8xf32> -> vector<4x32x8xf32>
    "tpu.trace_start"() <{level = 10 : i32, message = "hnd,hmd->hnm"}> : () -> ()
    %cst_17 = arith.constant dense<0.000000e+00> : vector<4x32x32xf32>
    %61 = tpu.matmul %42, %51, %cst_17 {dimension_numbers = #tpu.dot_dimension_numbers<[2], [2], [1], [1], [0, 0, 0, 1, 1, 1], [0], [0]>} : vector<4x32x8xf32>, vector<4x32x8xf32>, vector<4x32x32xf32> -> vector<4x32x32xf32>
    "tpu.trace_stop"() : () -> ()
    %c0_18 = arith.constant 0 : index
    %c0_19 = arith.constant 0 : index
    %c0_20 = arith.constant 0 : index
    %62 = vector.load %arg10[%c0_18, %c0_19, %c0_20] : memref<4x32x32xf32, #tpu.memory_space<vmem>>, vector<4x32x32xf32>
    %63 = arith.addf %61, %62 : vector<4x32x32xf32>
    %c0_21 = arith.constant 0 : index
    %c0_22 = arith.constant 0 : index
    %c0_23 = arith.constant 0 : index
    %c0_24 = arith.constant 0 : index
    %64 = vector.load %arg11[%c0_21, %c0_22, %c0_23, %c0_24] : memref<1x1x32x1xf32, #tpu.memory_space<vmem>>, vector<1x1x32x1xf32>
    %65 = vector.shape_cast %64 : vector<1x1x32x1xf32> to vector<32x1xf32>
    %c0_25 = arith.constant 0 : index
    %c0_26 = arith.constant 0 : index
    %c0_27 = arith.constant 0 : index
    %c0_28 = arith.constant 0 : index
    %66 = vector.load %arg12[%c0_25, %c0_26, %c0_27, %c0_28] : memref<1x1x1x32xf32, #tpu.memory_space<vmem>>, vector<1x1x1x32xf32>
    %67 = vector.shape_cast %66 : vector<1x1x1x32xf32> to vector<1x32xf32>
    %68 = vector.broadcast %65 : vector<32x1xf32> to vector<32x32xf32>
    %69 = vector.broadcast %67 : vector<1x32xf32> to vector<32x32xf32>
    %70 = arith.cmpf one, %68, %69 : vector<32x32xf32>
    %cst_29 = arith.constant -1.000000e+02 : f32
    %cst_30 = arith.constant 0.000000e+00 : f32
    %71 = vector.broadcast %cst_29 : f32 to vector<32x32xf32>
    %72 = vector.broadcast %cst_30 : f32 to vector<32x32xf32>
    %73 = arith.select %70, %71, %72 : vector<32x32xi1>, vector<32x32xf32>
    %74 = vector.shape_cast %73 : vector<32x32xf32> to vector<1x32x32xf32>
    %75 = vector.broadcast %74 : vector<1x32x32xf32> to vector<4x32x32xf32>
    %76 = arith.addf %63, %75 : vector<4x32x32xf32>
    %cst_31 = arith.constant dense<0xFF800000> : vector<4x32xf32>
    %77 = vector.multi_reduction <maximumf>, %76, %cst_31 [2] : vector<4x32x32xf32> to vector<4x32xf32>
    %78 = vector.shape_cast %77 : vector<4x32xf32> to vector<4x32x1xf32>
    %79 = vector.broadcast %78 : vector<4x32x1xf32> to vector<4x32x32xf32>
    %80 = arith.subf %76, %79 : vector<4x32x32xf32>
    %81 = math.exp %80 : vector<4x32x32xf32>
    %cst_32 = arith.constant dense<0.000000e+00> : vector<4x32xf32>
    %82 = vector.multi_reduction <add>, %81, %cst_32 [2] : vector<4x32x32xf32> to vector<4x32xf32>
    %83 = vector.shape_cast %82 : vector<4x32xf32> to vector<4x32x1xf32>
    %84 = tpu.reciprocal %83 {approx = true} : vector<4x32x1xf32> -> vector<4x32x1xf32>
    %85 = arith.mulf %83, %84 : vector<4x32x1xf32>
    %cst_33 = arith.constant 2.000000e+00 : f32
    %86 = vector.broadcast %cst_33 : f32 to vector<4x32x1xf32>
    %87 = arith.subf %86, %85 : vector<4x32x1xf32>
    %88 = arith.mulf %84, %87 : vector<4x32x1xf32>
    %89 = vector.broadcast %88 : vector<4x32x1xf32> to vector<4x32x32xf32>
    %90 = arith.mulf %81, %89 : vector<4x32x32xf32>
    "tpu.trace_start"() <{level = 10 : i32, message = "hnm,hmd->hnd"}> : () -> ()
    %cst_34 = arith.constant dense<0.000000e+00> : vector<4x32x8xf32>
    %91 = tpu.matmul %90, %60, %cst_34 {dimension_numbers = #tpu.dot_dimension_numbers<[2], [1], [1], [2], [0, 0, 0, 1, 1, 2], [0], [0]>} : vector<4x32x32xf32>, vector<4x32x8xf32>, vector<4x32x8xf32> -> vector<4x32x8xf32>
    "tpu.trace_stop"() : () -> ()
    %92 = vector.extract_strided_slice %91 {offsets = [0, 0, 0], sizes = [1, 32, 8], strides = [1, 1, 1]} : vector<4x32x8xf32> to vector<1x32x8xf32>
    %93 = vector.shape_cast %92 : vector<1x32x8xf32> to vector<32x8xf32>
    %94 = vector.extract_strided_slice %91 {offsets = [1, 0, 0], sizes = [1, 32, 8], strides = [1, 1, 1]} : vector<4x32x8xf32> to vector<1x32x8xf32>
    %95 = vector.shape_cast %94 : vector<1x32x8xf32> to vector<32x8xf32>
    %96 = vector.extract_strided_slice %91 {offsets = [2, 0, 0], sizes = [1, 32, 8], strides = [1, 1, 1]} : vector<4x32x8xf32> to vector<1x32x8xf32>
    %97 = vector.shape_cast %96 : vector<1x32x8xf32> to vector<32x8xf32>
    %98 = vector.extract_strided_slice %91 {offsets = [3, 0, 0], sizes = [1, 32, 8], strides = [1, 1, 1]} : vector<4x32x8xf32> to vector<1x32x8xf32>
    %99 = vector.shape_cast %98 : vector<1x32x8xf32> to vector<32x8xf32>
    %100 = tpu.concatenate %93, %95, %97, %99 in 1 : vector<32x8xf32>, vector<32x8xf32>, vector<32x8xf32>, vector<32x8xf32> -> vector<32x32xf32>
    %c0_35 = arith.constant 0 : index
    %c0_36 = arith.constant 0 : index
    %101 = vector.load %arg8[%c0_35, %c0_36] : memref<32x32xf32, #tpu.memory_space<vmem>>, vector<32x32xf32>
    %cst_37 = arith.constant dense<0.000000e+00> : vector<32x32xf32>
    %102 = tpu.matmul %100, %101, %cst_37 {dimension_numbers = #tpu.dot_dimension_numbers<[1], [0], [0], [1], [0, 0, 1, 1], [], []>} : vector<32x32xf32>, vector<32x32xf32>, vector<32x32xf32> -> vector<32x32xf32>
    %c0_38 = arith.constant 0 : index
    %c0_39 = arith.constant 0 : index
    %103 = vector.load %arg9[%c0_38, %c0_39] : memref<1x32xf32, #tpu.memory_space<vmem>>, vector<1x32xf32>
    %104 = vector.broadcast %103 : vector<1x32xf32> to vector<32x32xf32>
    %105 = arith.addf %102, %104 : vector<32x32xf32>
    %106 = vector.shape_cast %105 : vector<32x32xf32> to vector<4x8x32xf32>
    %c0_40 = arith.constant 0 : index
    %c0_41 = arith.constant 0 : index
    %c0_42 = arith.constant 0 : index
    %c0_43 = arith.constant 0 : index
    %107 = vector.load %arg13[%c0_40, %c0_41, %c0_42, %c0_43] : memref<1x4x8x32xf32, #tpu.memory_space<vmem>>, vector<1x4x8x32xf32>
    %108 = vector.shape_cast %107 : vector<1x4x8x32xf32> to vector<4x8x32xf32>
    %109 = vector.shape_cast %106 : vector<4x8x32xf32> to vector<1x4x8x32xf32>
    tpu.vector_store %arg13[%c0_40, %c0_41, %c0_42, %c0_43], %109 {strides = array<i32>} : memref<1x4x8x32xf32, #tpu.memory_space<vmem>>, vector<1x4x8x32xf32>,
    return
  }
  func.func @transform_0(%arg0: i32, %arg1: i32, %arg2: i32) -> (i32, i32, i32, i32) {
    %c0_i32 = arith.constant 0 : i32
    %c0_i32_0 = arith.constant 0 : i32
    return %arg0, %arg1, %arg2, %c0_i32 : i32, i32, i32, i32
  }
  func.func @transform_1(%arg0: i32, %arg1: i32, %arg2: i32) -> (i32, i32) {
    %c0_i32 = arith.constant 0 : i32
    %c0_i32_0 = arith.constant 0 : i32
    %c0_i32_1 = arith.constant 0 : i32
    return %c0_i32, %c0_i32_0 : i32, i32
  }
  func.func @transform_2(%arg0: i32, %arg1: i32, %arg2: i32) -> (i32, i32) {
    %c0_i32 = arith.constant 0 : i32
    %c0_i32_0 = arith.constant 0 : i32
    %c0_i32_1 = arith.constant 0 : i32
    return %c0_i32, %c0_i32_0 : i32, i32
  }
  func.func @transform_3(%arg0: i32, %arg1: i32, %arg2: i32) -> (i32, i32) {
    %c0_i32 = arith.constant 0 : i32
    %c0_i32_0 = arith.constant 0 : i32
    %c0_i32_1 = arith.constant 0 : i32
    return %c0_i32, %c0_i32_0 : i32, i32
  }
  func.func @transform_4(%arg0: i32, %arg1: i32, %arg2: i32) -> (i32, i32) {
    %c0_i32 = arith.constant 0 : i32
    %c0_i32_0 = arith.constant 0 : i32
    %c0_i32_1 = arith.constant 0 : i32
    return %c0_i32, %c0_i32_0 : i32, i32
  }
  func.func @transform_5(%arg0: i32, %arg1: i32, %arg2: i32) -> (i32, i32) {
    %c0_i32 = arith.constant 0 : i32
    %c0_i32_0 = arith.constant 0 : i32
    %c0_i32_1 = arith.constant 0 : i32
    return %c0_i32, %c0_i32_0 : i32, i32
  }
  func.func @transform_6(%arg0: i32, %arg1: i32, %arg2: i32) -> (i32, i32) {
    %c0_i32 = arith.constant 0 : i32
    %c0_i32_0 = arith.constant 0 : i32
    %c0_i32_1 = arith.constant 0 : i32
    return %c0_i32, %c0_i32_0 : i32, i32
  }
  func.func @transform_7(%arg0: i32, %arg1: i32, %arg2: i32) -> (i32, i32, i32) {
    %c0_i32 = arith.constant 0 : i32
    %c0_i32_0 = arith.constant 0 : i32
    %c0_i32_1 = arith.constant 0 : i32
    %c0_i32_2 = arith.constant 0 : i32
    return %c0_i32, %c0_i32_0, %c0_i32_1 : i32, i32, i32
  }
  func.func @transform_8(%arg0: i32, %arg1: i32, %arg2: i32) -> (i32, i32, i32, i32) {
    %c0_i32 = arith.constant 0 : i32
    %c0_i32_0 = arith.constant 0 : i32
    %c0_i32_1 = arith.constant 0 : i32
    return %arg1, %arg2, %c0_i32, %c0_i32_0 : i32, i32, i32, i32
  }
  func.func @transform_9(%arg0: i32, %arg1: i32, %arg2: i32) -> (i32, i32, i32, i32) {
    %c0_i32 = arith.constant 0 : i32
    %c0_i32_0 = arith.constant 0 : i32
    %c0_i32_1 = arith.constant 0 : i32
    return %arg1, %arg2, %c0_i32, %c0_i32_0 : i32, i32, i32, i32
  }
  func.func @transform_10(%arg0: i32, %arg1: i32, %arg2: i32) -> (i32, i32, i32, i32) {
    %c0_i32 = arith.constant 0 : i32
    %c0_i32_0 = arith.constant 0 : i32
    return %arg0, %arg1, %arg2, %c0_i32 : i32, i32, i32, i32
  }
}

</mosaic_0001>

<llo_original>
// kernel: tpu_custom_call.1
$region0: #{tpu_custom_call.1}
  #allocation0 [shape = 'u32[]', space=smem, size = 0x4, offset = 0x4, fixed_abs, tag = 'smem constant byte address 0x4 - core index']
  #allocation1 [shape = 'u32[144,128]{1,0:T(1,128)}', space=vmem, size = 0x12000, scoped, tag = 'internal scratch']
  %s0 = inlined_call_operand.hbm [shape: f32[2,8,8,32], index: 0, kind: input, shape index: {}]
  %s1 = inlined_call_operand.vmem [shape: f32[1,32], index: 1, kind: input, shape index: {}]
  %s2 = inlined_call_operand.vmem [shape: f32[1,32], index: 2, kind: input, shape index: {}]
  %s3 = inlined_call_operand.vmem [shape: f32[32,96], index: 3, kind: input, shape index: {}]
  %s4 = inlined_call_operand.vmem [shape: f32[1,96], index: 4, kind: input, shape index: {}]
  %s5 = inlined_call_operand.vmem [shape: f32[32,32], index: 5, kind: input, shape index: {}]
  %s6 = inlined_call_operand.vmem [shape: f32[1,32], index: 6, kind: input, shape index: {}]
  %s7 = inlined_call_operand.hbm [shape: f32[4,32,32], index: 7, kind: input, shape index: {}]
  %s8 = inlined_call_operand.vmem [shape: f32[2,1,32,1], index: 8, kind: input, shape index: {}]
  %s9 = inlined_call_operand.vmem [shape: f32[2,1,1,32], index: 9, kind: input, shape index: {}]
  %s10 = inlined_call_operand.hbm [shape: f32[2,8,8,32], index: 10, kind: output, shape index: {}]
  %s11 = sld [smem:[#allocation0]]
  $region81: #{tpu_custom_call.1} parent=0
    _
  %s13 = ssub.s32 1, %s11
  %s14 = scalar_select 0, %s13, %s11
  $region1: #{tpu_custom_call.1} parent=0
    #allocation2 [shape = 'u8[32768]{0}', space=vmem, size = 0x8000, scoped, tag = 'input window, operand 0']
    #allocation3 [shape = 's32[2]{0}', space=sflag, size = 0x8, scoped, tag = 'scoped memory for tpu_custom_call.1']
    #allocation4 [shape = 's32[2]{0}', space=sflag, size = 0x8, scoped, tag = 'scoped memory for tpu_custom_call.1']
    #allocation5 [shape = 'u8[65536]{0}', space=vmem, size = 0x10000, scoped, tag = 'input window, operand 7, single buffered']
    #allocation6 [shape = 's32[1]{0}', space=sflag, size = 0x4, scoped, tag = 'scoped memory for tpu_custom_call.1']
    #allocation7 [shape = 'u8[32768]{0}', space=vmem, size = 0x8000, scoped, tag = 'output window, operand 0']
    %15 = vsyncpa [#allocation3], 0
    %s16 = scalar_lea.sflag [#allocation3], 1
    %17 = vsyncpa %s16, 0
    %18 = vsyncpa [#allocation6], 0
    %19 = vsyncpa [#allocation4], 0
    %s20 = scalar_lea.sflag [#allocation4], 1
    %21 = vsyncpa %s20, 0
    loop: start=0, step=1, limit=6
    $region2: #{tpu_custom_call.1} parent=1 // loop_pre_header
      _
    $region3: #{tpu_custom_call.1} parent=1 // loop_header
      %s23 = sphi 0, %s27
      %p24 = scmp.ge.s32.totalorder %s23, 6
      %s30 = sphi 0, %s49
      %s31 = sphi 0, %s45
      %s32 = sphi 0, %s41
      %s33 = sphi 0, %s30
      %s34 = sphi 0, %s31
      %s35 = sphi 0, %s32
      %s36 = sphi 0, %s33
      %s37 = sphi 0, %s34
      %s38 = sphi 0, %s35
      %s56 = sphi 0, %s58
      %s59 = sphi 0, %s56
      %s60 = sphi 0, %s59
      %s76 = sphi 0, %s60
      %s80 = sphi 0, %s80
      %s82 = sphi 0, %s80
      %s83 = sphi 0, %s82
      %s97 = sphi 0, %s83
      %s101 = sphi 0, %s101
      %s103 = sphi 0, %s101
      %s104 = sphi 0, %s103
      %s118 = sphi 0, %s104
      %s122 = sphi 0, %s122
      %s124 = sphi 0, %s122
      %s125 = sphi 0, %s124
      %s139 = sphi 0, %s125
      %s143 = sphi 0, %s143
      %s145 = sphi 0, %s143
      %s146 = sphi 0, %s145
      %s160 = sphi 0, %s146
      %s164 = sphi 0, %s164
      %s166 = sphi 0, %s164
      %s167 = sphi 0, %s166
      %s181 = sphi 0, %s167
      %s185 = sphi 0, %s185
      %s187 = sphi 0, %s185
      %s188 = sphi 0, %s187
      %s202 = sphi 0, %s188
      %s206 = sphi 0, %s206
      %s208 = sphi 0, %s206
      %s209 = sphi 0, %s208
      %s223 = sphi 0, %s209
      %s231 = sphi 0, %s233
      %s234 = sphi 0, %s231
      %s235 = sphi 0, %s234
      %s251 = sphi 0, %s235
      %s259 = sphi 0, %s261
      %s262 = sphi 0, %s259
      %s263 = sphi 0, %s262
      %s279 = sphi 0, %s263
      %s289 = sphi 0, %s291
      %s292 = sphi 0, %s289
      %s293 = sphi 0, %s292
      %s309 = sphi 0, %s293
    $region4: #{tpu_custom_call.1} parent=1 // loop_header_branch
      %26 = sbr.rel (%p24) target = $region8
    $region5: #{tpu_custom_call.1} parent=1 // loop_body
      %s28 = ssub.s32 %s23, 1
      %s29 = ssub.s32 %s23, 2
      %s39 = sadd.s32 1, %s32
      %p40 = scmp.ge.s32.totalorder %s39, 1
      %s41 = scalar_select %p40, 0, %s39
      %s42 = sadd.s32 1, %s31
      %s43 = scalar_select %p40, %s42, %s31
      %p44 = scmp.ge.s32.totalorder %s43, 2
      %s45 = scalar_select %p44, 0, %s43
      %s46 = sadd.s32 1, %s30
      %s47 = scalar_select %p44, %s46, %s30
      %p48 = scmp.ge.s32.totalorder %s47, 2
      %s49 = scalar_select %p48, 0, %s47
      %s50 = ssub.s32 %s30, %s49
      %s51 = ssub.s32 %s31, %s45
      %s52 = sor.u32 %s50, %s51
      %s53 = ssub.s32 %s32, %s41
      %s54 = sor.u32 %s52, %s53
      %p55 = scmp.eq.s32.totalorder %s54, 0
      %s57 = sadd.s32 %s56, 1
      %s58 = scalar_select %p55, %s56, %s57
      %p61 = pneg %p55
      %p62 = scmp.eq.s32.totalorder %s23, 3
      %p63 = por %p61, %p62
      %p64 = scmp.ne.s32.totalorder %s56, %s59
      %p65 = scmp.eq.s32.totalorder %s23, 0
      %p66 = por %p64, %p65
      %p67 = scmp.ne.s32.totalorder %s56, %s59
      %p68 = scmp.eq.s32.totalorder %s28, 3
      %p69 = por %p67, %p68
      %p70 = scmp.ne.s32.totalorder %s59, %s60
      %p71 = scmp.eq.s32.totalorder %s28, 0
      %p72 = por %p70, %p71
      %p73 = scmp.ne.s32.totalorder %s59, %s60
      %p74 = scmp.eq.s32.totalorder %s29, 3
      %p75 = por %p73, %p74
      %p77 = scmp.ne.s32.totalorder %s60, %s76
      %p78 = scmp.eq.s32.totalorder %s29, 0
      %p79 = por %p77, %p78
      %s81 = sadd.s32 %s80, 1
      %p84 = scmp.eq.s32.totalorder %s23, 3
      %p85 = scmp.ne.s32.totalorder %s80, %s82
      %p86 = scmp.eq.s32.totalorder %s23, 0
      %p87 = por %p85, %p86
      %p88 = scmp.ne.s32.totalorder %s80, %s82
      %p89 = scmp.eq.s32.totalorder %s28, 3
      %p90 = por %p88, %p89
      %p91 = scmp.ne.s32.totalorder %s82, %s83
      %p92 = scmp.eq.s32.totalorder %s28, 0
      %p93 = por %p91, %p92
      %p94 = scmp.ne.s32.totalorder %s82, %s83
      %p95 = scmp.eq.s32.totalorder %s29, 3
      %p96 = por %p94, %p95
      %p98 = scmp.ne.s32.totalorder %s83, %s97
      %p99 = scmp.eq.s32.totalorder %s29, 0
      %p100 = por %p98, %p99
      %s102 = sadd.s32 %s101, 1
      %p105 = scmp.eq.s32.totalorder %s23, 3
      %p106 = scmp.ne.s32.totalorder %s101, %s103
      %p107 = scmp.eq.s32.totalorder %s23, 0
      %p108 = por %p106, %p107
      %p109 = scmp.ne.s32.totalorder %s101, %s103
      %p110 = scmp.eq.s32.totalorder %s28, 3
      %p111 = por %p109, %p110
      %p112 = scmp.ne.s32.totalorder %s103, %s104
      %p113 = scmp.eq.s32.totalorder %s28, 0
      %p114 = por %p112, %p113
      %p115 = scmp.ne.s32.totalorder %s103, %s104
      %p116 = scmp.eq.s32.totalorder %s29, 3
      %p117 = por %p115, %p116
      %p119 = scmp.ne.s32.totalorder %s104, %s118
      %p120 = scmp.eq.s32.totalorder %s29, 0
      %p121 = por %p119, %p120
      %s123 = sadd.s32 %s122, 1
      %p126 = scmp.eq.s32.totalorder %s23, 3
      %p127 = scmp.ne.s32.totalorder %s122, %s124
      %p128 = scmp.eq.s32.totalorder %s23, 0
      %p129 = por %p127, %p128
      %p130 = scmp.ne.s32.totalorder %s122, %s124
      %p131 = scmp.eq.s32.totalorder %s28, 3
      %p132 = por %p130, %p131
      %p133 = scmp.ne.s32.totalorder %s124, %s125
      %p134 = scmp.eq.s32.totalorder %s28, 0
      %p135 = por %p133, %p134
      %p136 = scmp.ne.s32.totalorder %s124, %s125
      %p137 = scmp.eq.s32.totalorder %s29, 3
      %p138 = por %p136, %p137
      %p140 = scmp.ne.s32.totalorder %s125, %s139
      %p141 = scmp.eq.s32.totalorder %s29, 0
      %p142 = por %p140, %p141
      %s144 = sadd.s32 %s143, 1
      %p147 = scmp.eq.s32.totalorder %s23, 3
      %p148 = scmp.ne.s32.totalorder %s143, %s145
      %p149 = scmp.eq.s32.totalorder %s23, 0
      %p150 = por %p148, %p149
      %p151 = scmp.ne.s32.totalorder %s143, %s145
      %p152 = scmp.eq.s32.totalorder %s28, 3
      %p153 = por %p151, %p152
      %p154 = scmp.ne.s32.totalorder %s145, %s146
      %p155 = scmp.eq.s32.totalorder %s28, 0
      %p156 = por %p154, %p155
      %p157 = scmp.ne.s32.totalorder %s145, %s146
      %p158 = scmp.eq.s32.totalorder %s29, 3
      %p159 = por %p157, %p158
      %p161 = scmp.ne.s32.totalorder %s146, %s160
      %p162 = scmp.eq.s32.totalorder %s29, 0
      %p163 = por %p161, %p162
      %s165 = sadd.s32 %s164, 1
      %p168 = scmp.eq.s32.totalorder %s23, 3
      %p169 = scmp.ne.s32.totalorder %s164, %s166
      %p170 = scmp.eq.s32.totalorder %s23, 0
      %p171 = por %p169, %p170
      %p172 = scmp.ne.s32.totalorder %s164, %s166
      %p173 = scmp.eq.s32.totalorder %s28, 3
      %p174 = por %p172, %p173
      %p175 = scmp.ne.s32.totalorder %s166, %s167
      %p176 = scmp.eq.s32.totalorder %s28, 0
      %p177 = por %p175, %p176
      %p178 = scmp.ne.s32.totalorder %s166, %s167
      %p179 = scmp.eq.s32.totalorder %s29, 3
      %p180 = por %p178, %p179
      %p182 = scmp.ne.s32.totalorder %s167, %s181
      %p183 = scmp.eq.s32.totalorder %s29, 0
      %p184 = por %p182, %p183
      %s186 = sadd.s32 %s185, 1
      %p189 = scmp.eq.s32.totalorder %s23, 3
      %p190 = scmp.ne.s32.totalorder %s185, %s187
      %p191 = scmp.eq.s32.totalorder %s23, 0
      %p192 = por %p190, %p191
      %p193 = scmp.ne.s32.totalorder %s185, %s187
      %p194 = scmp.eq.s32.totalorder %s28, 3
      %p195 = por %p193, %p194
      %p196 = scmp.ne.s32.totalorder %s187, %s188
      %p197 = scmp.eq.s32.totalorder %s28, 0
      %p198 = por %p196, %p197
      %p199 = scmp.ne.s32.totalorder %s187, %s188
      %p200 = scmp.eq.s32.totalorder %s29, 3
      %p201 = por %p199, %p200
      %p203 = scmp.ne.s32.totalorder %s188, %s202
      %p204 = scmp.eq.s32.totalorder %s29, 0
      %p205 = por %p203, %p204
      %s207 = sadd.s32 %s206, 1
      %p210 = scmp.eq.s32.totalorder %s23, 3
      %p211 = scmp.ne.s32.totalorder %s206, %s208
      %p212 = scmp.eq.s32.totalorder %s23, 0
      %p213 = por %p211, %p212
      %p214 = scmp.ne.s32.totalorder %s206, %s208
      %p215 = scmp.eq.s32.totalorder %s28, 3
      %p216 = por %p214, %p215
      %p217 = scmp.ne.s32.totalorder %s208, %s209
      %p218 = scmp.eq.s32.totalorder %s28, 0
      %p219 = por %p217, %p218
      %p220 = scmp.ne.s32.totalorder %s208, %s209
      %p221 = scmp.eq.s32.totalorder %s29, 3
      %p222 = por %p220, %p221
      %p224 = scmp.ne.s32.totalorder %s209, %s223
      %p225 = scmp.eq.s32.totalorder %s29, 0
      %p226 = por %p224, %p225
      %s227 = ssub.s32 %s31, %s45
      %s228 = ssub.s32 %s32, %s41
      %s229 = sor.u32 %s227, %s228
      %p230 = scmp.eq.s32.totalorder %s229, 0
      %s232 = sadd.s32 %s231, 1
      %s233 = scalar_select %p230, %s231, %s232
      %p236 = pneg %p230
      %p237 = scmp.eq.s32.totalorder %s23, 3
      %p238 = por %p236, %p237
      %p239 = scmp.ne.s32.totalorder %s231, %s234
      %p240 = scmp.eq.s32.totalorder %s23, 0
      %p241 = por %p239, %p240
      %p242 = scmp.ne.s32.totalorder %s231, %s234
      %p243 = scmp.eq.s32.totalorder %s28, 3
      %p244 = por %p242, %p243
      %p245 = scmp.ne.s32.totalorder %s234, %s235
      %p246 = scmp.eq.s32.totalorder %s28, 0
      %p247 = por %p245, %p246
      %p248 = scmp.ne.s32.totalorder %s234, %s235
      %p249 = scmp.eq.s32.totalorder %s29, 3
      %p250 = por %p248, %p249
      %p252 = scmp.ne.s32.totalorder %s235, %s251
      %p253 = scmp.eq.s32.totalorder %s29, 0
      %p254 = por %p252, %p253
      %s255 = ssub.s32 %s31, %s45
      %s256 = ssub.s32 %s32, %s41
      %s257 = sor.u32 %s255, %s256
      %p258 = scmp.eq.s32.totalorder %s257, 0
      %s260 = sadd.s32 %s259, 1
      %s261 = scalar_select %p258, %s259, %s260
      %p264 = pneg %p258
      %p265 = scmp.eq.s32.totalorder %s23, 3
      %p266 = por %p264, %p265
      %p267 = scmp.ne.s32.totalorder %s259, %s262
      %p268 = scmp.eq.s32.totalorder %s23, 0
      %p269 = por %p267, %p268
      %p270 = scmp.ne.s32.totalorder %s259, %s262
      %p271 = scmp.eq.s32.totalorder %s28, 3
      %p272 = por %p270, %p271
      %p273 = scmp.ne.s32.totalorder %s262, %s263
      %p274 = scmp.eq.s32.totalorder %s28, 0
      %p275 = por %p273, %p274
      %p276 = scmp.ne.s32.totalorder %s262, %s263
      %p277 = scmp.eq.s32.totalorder %s29, 3
      %p278 = por %p276, %p277
      %p280 = scmp.ne.s32.totalorder %s263, %s279
      %p281 = scmp.eq.s32.totalorder %s29, 0
      %p282 = por %p280, %p281
      %s283 = ssub.s32 %s30, %s49
      %s284 = ssub.s32 %s31, %s45
      %s285 = sor.u32 %s283, %s284
      %s286 = ssub.s32 %s32, %s41
      %s287 = sor.u32 %s285, %s286
      %p288 = scmp.eq.s32.totalorder %s287, 0
      %s290 = sadd.s32 %s289, 1
      %s291 = scalar_select %p288, %s289, %s290
      %p294 = pneg %p288
      %p295 = scmp.eq.s32.totalorder %s23, 3
      %p296 = por %p294, %p295
      %p297 = scmp.ne.s32.totalorder %s289, %s292
      %p298 = scmp.eq.s32.totalorder %s23, 0
      %p299 = por %p297, %p298
      %p300 = scmp.ne.s32.totalorder %s289, %s292
      %p301 = scmp.eq.s32.totalorder %s28, 3
      %p302 = por %p300, %p301
      %p303 = scmp.ne.s32.totalorder %s292, %s293
      %p304 = scmp.eq.s32.totalorder %s28, 0
      %p305 = por %p303, %p304
      %p306 = scmp.ne.s32.totalorder %s292, %s293
      %p307 = scmp.eq.s32.totalorder %s29, 3
      %p308 = por %p306, %p307
      %p310 = scmp.ne.s32.totalorder %s293, %s309
      %p311 = scmp.eq.s32.totalorder %s29, 0
      %p312 = por %p310, %p311
      %p313 = scmp.le.s32.totalorder 1, %s23
      %p314 = scmp.lt.s32.totalorder %s23, 5
      %p315 = pnand %p313, %p314
      %p316 = pneg %p315
      // Predicated region
      $region9: #{tpu_custom_call.1} parent=5 // pred_check
        _
      $region10: #{tpu_custom_call.1} parent=5 // pred_check_branch
        %318 = sbr.rel (%p315) target = $region12
      $region11: #{tpu_custom_call.1} parent=5 // pred_region
        %s319 = ssub.s32 %s23, 1
        // Predicated region
        $region13: #{tpu_custom_call.1} parent=11 // pred_check
          %p320 = pneg %p93
        $region14: #{tpu_custom_call.1} parent=11 // pred_check_branch
          %322 = sbr.rel (%p320) target = $region16
        $region15: #{tpu_custom_call.1} parent=11 // pred_region
          _
        $region16: #{tpu_custom_call.1} parent=11 // pred_fallthru
          _
        // Predicated region
        $region17: #{tpu_custom_call.1} parent=11 // pred_check
          %p323 = pneg %p114
        $region18: #{tpu_custom_call.1} parent=11 // pred_check_branch
          %325 = sbr.rel (%p323) target = $region20
        $region19: #{tpu_custom_call.1} parent=11 // pred_region
          _
        $region20: #{tpu_custom_call.1} parent=11 // pred_fallthru
          _
        // Predicated region
        $region21: #{tpu_custom_call.1} parent=11 // pred_check
          %p326 = pneg %p135
        $region22: #{tpu_custom_call.1} parent=11 // pred_check_branch
          %328 = sbr.rel (%p326) target = $region24
        $region23: #{tpu_custom_call.1} parent=11 // pred_region
          _
        $region24: #{tpu_custom_call.1} parent=11 // pred_fallthru
          _
        // Predicated region
        $region25: #{tpu_custom_call.1} parent=11 // pred_check
          %p329 = pneg %p156
        $region26: #{tpu_custom_call.1} parent=11 // pred_check_branch
          %331 = sbr.rel (%p329) target = $region28
        $region27: #{tpu_custom_call.1} parent=11 // pred_region
          _
        $region28: #{tpu_custom_call.1} parent=11 // pred_fallthru
          _
        // Predicated region
        $region29: #{tpu_custom_call.1} parent=11 // pred_check
          %p332 = pneg %p177
        $region30: #{tpu_custom_call.1} parent=11 // pred_check_branch
          %334 = sbr.rel (%p332) target = $region32
        $region31: #{tpu_custom_call.1} parent=11 // pred_region
          _
        $region32: #{tpu_custom_call.1} parent=11 // pred_fallthru
          _
        // Predicated region
        $region33: #{tpu_custom_call.1} parent=11 // pred_check
          %p335 = pneg %p198
        $region34: #{tpu_custom_call.1} parent=11 // pred_check_branch
          %337 = sbr.rel (%p335) target = $region36
        $region35: #{tpu_custom_call.1} parent=11 // pred_region
          _
        $region36: #{tpu_custom_call.1} parent=11 // pred_fallthru
          _
        // Predicated region
        $region37: #{tpu_custom_call.1} parent=11 // pred_check
          %p338 = pneg %p219
        $region38: #{tpu_custom_call.1} parent=11 // pred_check_branch
          %340 = sbr.rel (%p338) target = $region40
        $region39: #{tpu_custom_call.1} parent=11 // pred_region
          %s342 = ssub.s32 2048, 2048
          %343 = vsyncadd [#allocation6], %s342
          %s344 = sshll.u32 [#allocation5], 4
          %s345 = int_to_ptr.vmem [resolvable:$true] %s344
          %350 = dma.hbm_to_vmem [thread:$0]  %s7, 2048, %s345, [#allocation6], 128, 128, 8
        $region40: #{tpu_custom_call.1} parent=11 // pred_fallthru
          _
      $region12: #{tpu_custom_call.1} parent=5 // pred_fallthru
        _
      %p351 = scmp.lt.s32.totalorder %s23, 4
      // Predicated region
      $region41: #{tpu_custom_call.1} parent=5 // pred_check
        %p352 = pneg %p351
      $region42: #{tpu_custom_call.1} parent=5 // pred_check_branch
        %354 = sbr.rel (%p352) target = $region44
      $region43: #{tpu_custom_call.1} parent=5 // pred_region
        // Predicated region
        $region45: #{tpu_custom_call.1} parent=43 // pred_check
          %p355 = pneg %p66
        $region46: #{tpu_custom_call.1} parent=43 // pred_check_branch
          %357 = sbr.rel (%p355) target = $region48
        $region47: #{tpu_custom_call.1} parent=43 // pred_region
          %s358 = sand.u32 %s56, 1
          %s359 = scalar_lea.sflag [#allocation3], %s358
          %s360 = sand.u32 %s56, 1
          %s361 = smul.addr %s360, 32
          %s362 = scalar_lea.vmem [#allocation2], %s361
          %s363 = smul.u32 4, %s31
          %s365 = ssub.s32 512, 512
          %366 = vsyncadd %s359, %s365
          %s367 = sadd.s32 %s32, %s363
          %s368 = smul.addr %s30, 8
          %s369 = sadd.s32 %s367, %s368
          %s370 = smul.addr %s369, 128
          %s371 = scalar_lea.hbm %s0, %s370
          %s372 = sshll.u32 %s362, 4
          %s373 = int_to_ptr.vmem [resolvable:$true] %s372
          %378 = dma.hbm_to_vmem [thread:$0]  %s371, 512, %s373, %s359, 128, 128, 8
        $region48: #{tpu_custom_call.1} parent=43 // pred_fallthru
          _
        // Predicated region
        $region49: #{tpu_custom_call.1} parent=43 // pred_check
          %p379 = pneg %p241
        $region50: #{tpu_custom_call.1} parent=43 // pred_check_branch
          %381 = sbr.rel (%p379) target = $region52
        $region51: #{tpu_custom_call.1} parent=43 // pred_region
          %p382 = scmp.lt.s32.totalorder %s31, 1
          %s383 = scalar_select %p382, %s31, 1
          %p384 = scmp.lt.s32.totalorder %s32, 0
          %s385 = scalar_select %p384, %s32, 0
          %s386 = smul.addr %s385, 4
          %s387 = smul.addr %s383, 4
          %s388 = sadd.s32 %s386, %s387
          %s389 = smul.addr %s388, 8
          %s390 = scalar_lea.vmem %s8, %s389
        $region52: #{tpu_custom_call.1} parent=43 // pred_fallthru
          _
        // Predicated region
        $region53: #{tpu_custom_call.1} parent=43 // pred_check
          %p391 = pneg %p269
        $region54: #{tpu_custom_call.1} parent=43 // pred_check_branch
          %393 = sbr.rel (%p391) target = $region56
        $region55: #{tpu_custom_call.1} parent=43 // pred_region
          %p394 = scmp.lt.s32.totalorder %s31, 1
          %s395 = scalar_select %p394, %s31, 1
          %p396 = scmp.lt.s32.totalorder %s32, 0
          %s397 = scalar_select %p396, %s32, 0
          %s398 = sadd.s32 %s397, %s395
          %s399 = scalar_lea.vmem %s9, %s398
        $region56: #{tpu_custom_call.1} parent=43 // pred_fallthru
          _
      $region44: #{tpu_custom_call.1} parent=5 // pred_fallthru
        _
      %p400 = scmp.le.s32.totalorder 1, %s23
      %p401 = scmp.lt.s32.totalorder %s23, 5
      %p402 = pnand %p400, %p401
      %p403 = pneg %p402
      // Predicated region
      $region57: #{tpu_custom_call.1} parent=5 // pred_check
        _
      $region58: #{tpu_custom_call.1} parent=5 // pred_check_branch
        %405 = sbr.rel (%p402) target = $region60
      $region59: #{tpu_custom_call.1} parent=5 // pred_region
        %s406 = ssub.s32 %s23, 1
        %s407 = sand.u32 %s59, 1
        %s408 = scalar_lea.sflag [#allocation3], %s407
        %s409 = sand.u32 %s59, 1
        %s410 = smul.addr %s409, 32
        %s411 = scalar_lea.vmem [#allocation2], %s410
        // Predicated region
        $region61: #{tpu_custom_call.1} parent=59 // pred_check
          %p412 = pneg %p72
        $region62: #{tpu_custom_call.1} parent=59 // pred_check_branch
          %414 = sbr.rel (%p412) target = $region64
        $region63: #{tpu_custom_call.1} parent=59 // pred_region
          %415 = dma.done %s408, 512
        $region64: #{tpu_custom_call.1} parent=59 // pred_fallthru
          _
        // Predicated region
        $region65: #{tpu_custom_call.1} parent=59 // pred_check
          %p416 = pneg %p219
        $region66: #{tpu_custom_call.1} parent=59 // pred_check_branch
          %418 = sbr.rel (%p416) target = $region68
        $region67: #{tpu_custom_call.1} parent=59 // pred_region
          %419 = dma.done [#allocation6], 2048
        $region68: #{tpu_custom_call.1} parent=59 // pred_fallthru
          _
        %s420 = sand.u32 %s59, 1
        %s421 = scalar_lea.sflag [#allocation3], %s420
        %s422 = sand.u32 %s59, 1
        %s423 = smul.addr %s422, 32
        %s424 = scalar_lea.vmem [#allocation2], %s423
        %p425 = pneg %p72
        %p426 = pneg %p69
        %p427 = pneg %p93
        %p428 = pneg %p90
        %p429 = pneg %p114
        %p430 = pneg %p111
        %p431 = pneg %p135
        %p432 = pneg %p132
        %p433 = pneg %p156
        %p434 = pneg %p153
        %p435 = pneg %p177
        %p436 = pneg %p174
        %p437 = pneg %p198
        %p438 = pneg %p195
        %p439 = pneg %p219
        %p440 = pneg %p216
        %p441 = scmp.lt.s32.totalorder %s34, 1
        %s442 = scalar_select %p441, %s34, 1
        %p443 = scmp.lt.s32.totalorder %s35, 0
        %s444 = scalar_select %p443, %s35, 0
        %s445 = smul.addr %s444, 4
        %s446 = smul.addr %s442, 4
        %s447 = sadd.s32 %s445, %s446
        %s448 = smul.addr %s447, 8
        %s449 = scalar_lea.vmem %s8, %s448
        %p450 = pneg %p247
        %p451 = pneg %p244
        %p452 = scmp.lt.s32.totalorder %s34, 1
        %s453 = scalar_select %p452, %s34, 1
        %p454 = scmp.lt.s32.totalorder %s35, 0
        %s455 = scalar_select %p454, %s35, 0
        %s456 = sadd.s32 %s455, %s453
        %s457 = scalar_lea.vmem %s9, %s456
        %p458 = pneg %p275
        %p459 = pneg %p272
        %p460 = pneg %p305
        %p461 = pneg %p302
        %s462 = sand.u32 %s292, 1
        %s463 = scalar_lea.sflag [#allocation4], %s462
        %s464 = sand.u32 %s292, 1
        %s465 = smul.addr %s464, 32
        %s466 = scalar_lea.vmem [#allocation7], %s465
        %s467 = smul.u32 4, %s34
        %p468 = scmp.lt.s32.totalorder %s34, 1
        %s469 = scalar_select %p468, %s34, 1
        %p470 = scmp.lt.s32.totalorder %s35, 0
        %s471 = scalar_select %p470, %s35, 0
        %s472 = smul.addr %s471, 4
        %s473 = smul.addr %s469, 4
        %s474 = sadd.s32 %s472, %s473
        %s475 = smul.addr %s474, 8
        %s476 = scalar_lea.vmem %s8, %s475
        %p477 = scmp.lt.s32.totalorder %s34, 1
        %s478 = scalar_select %p477, %s34, 1
        %p479 = scmp.lt.s32.totalorder %s35, 0
        %s480 = scalar_select %p479, %s35, 0
        %s481 = sadd.s32 %s480, %s478
        %s482 = scalar_lea.vmem %s9, %s481
        %s483 = smul.u32 4, %s34
        %v484 = vld [vmem:[%s411] sm:$0xff]
        %v485 = vld [vmem:[%s411 + $0x8] sm:$0xff]
        %v486 = vld [vmem:[%s411 + $0x10] sm:$0xff]
        %v487 = vld [vmem:[%s411 + $0x18] sm:$0xff]
        %vm488 = vcmask 261120
        %v489 = vsel %vm488, %v484, 0.0
        %490 = vadd.xlane.f32.xlu0 %v489
        %v491 = vpop.xlane.xlu0 %490
        %v492 = vsel %vm488, %v485, 0.0
        %493 = vadd.xlane.f32.xlu0 %v492
        %v494 = vpop.xlane.xlu0 %493
        %v495 = vsel %vm488, %v486, 0.0
        %496 = vadd.xlane.f32.xlu0 %v495
        %v497 = vpop.xlane.xlu0 %496
        %v498 = vsel %vm488, %v487, 0.0
        %499 = vadd.xlane.f32.xlu0 %v498
        %v500 = vpop.xlane.xlu0 %499
        %v501 = vrcp.pop 32.0
        %v502 = vmul.f32 %v491, %v501
        %v503 = vmul.f32 %v494, %v501
        %v504 = vmul.f32 %v497, %v501
        %v505 = vmul.f32 %v500, %v501
        %v506 = vsub.f32 %v484, %v502
        %v507 = vsub.f32 %v485, %v503
        %v508 = vsub.f32 %v486, %v504
        %v509 = vsub.f32 %v487, %v505
        %v510 = vmul.f32 %v506, %v506
        %v511 = vmul.f32 %v507, %v507
        %v512 = vmul.f32 %v508, %v508
        %v513 = vmul.f32 %v509, %v509
        %v514 = vsel %vm488, %v510, 0.0
        %515 = vadd.xlane.f32.xlu0 %v514
        %v516 = vpop.xlane.xlu0 %515
        %v517 = vsel %vm488, %v511, 0.0
        %518 = vadd.xlane.f32.xlu0 %v517
        %v519 = vpop.xlane.xlu0 %518
        %v520 = vsel %vm488, %v512, 0.0
        %521 = vadd.xlane.f32.xlu0 %v520
        %v522 = vpop.xlane.xlu0 %521
        %v523 = vsel %vm488, %v513, 0.0
        %524 = vadd.xlane.f32.xlu0 %v523
        %v525 = vpop.xlane.xlu0 %524
        %v526 = vmul.f32 %v516, %v501
        %v527 = vmul.f32 %v519, %v501
        %v528 = vmul.f32 %v522, %v501
        %v529 = vmul.f32 %v525, %v501
        %v530 = vadd.f32 %v526, 1e-05
        %v531 = vadd.f32 %v527, 1e-05
        %v532 = vadd.f32 %v528, 1e-05
        %v533 = vadd.f32 %v529, 1e-05
        %v534 = vrsqrt.pop %v530
        %v535 = vrsqrt.pop %v531
        %v536 = vrsqrt.pop %v532
        %v537 = vrsqrt.pop %v533
        %v538 = vmul.f32 %v506, %v534
        %v539 = vmul.f32 %v507, %v535
        %v540 = vmul.f32 %v508, %v536
        %v541 = vmul.f32 %v509, %v537
        %v542 = vld [vmem:[%s1] sm:$0x1]
        %v544 = vlaneseq
        %v545 = vshrl.u32 %v544, 7
        %v546 = vsub.s32 0, %v545
        %v547 = vrot.slane %v542, %v546
        %v549 = vmul.f32 %v538, %v547
        %v550 = vmul.f32 %v539, %v547
        %v551 = vmul.f32 %v540, %v547
        %v552 = vmul.f32 %v541, %v547
        %v553 = vld [vmem:[%s2] sm:$0x1]
        %v555 = vlaneseq
        %v556 = vshrl.u32 %v555, 7
        %v557 = vsub.s32 0, %v556
        %v558 = vrot.slane %v553, %v557
        %v560 = vadd.f32 %v549, %v558
        %v561 = vadd.f32 %v550, %v558
        %v562 = vadd.f32 %v551, %v558
        %v563 = vadd.f32 %v552, %v558
        %v564 = vld [vmem:[%s3] sm:$0xff]
        %v565 = vld [vmem:[%s3 + $0x8] sm:$0xff]
        %v566 = vld [vmem:[%s3 + $0x10] sm:$0xff]
        %v567 = vld [vmem:[%s3 + $0x18] sm:$0xff]
        %v568 = vld [vmem:[%s4] sm:$0x1]
        %v570 = vlaneseq
        %v571 = vshrl.u32 %v570, 7
        %v572 = vsub.s32 0, %v571
        %v573 = vrot.slane %v568, %v572
        %v576 = vsel %vm488, %v560, 0
        %v579 = vsel %vm488, %v561, 0
        %v582 = vsel %vm488, %v562, 0
        %v585 = vsel %vm488, %v563, 0
        %587 = vmatprep.subr.mxu0 0.0
        %588 = vmatpush1.msra.mxu0 %v564
        %589 = vmatprep.subr.mxu0 0.0
        %590 = vmatpush1.msra.mxu0 %v565
        %591 = vmatprep.subr.mxu0 0.0
        %592 = vmatpush1.msra.mxu0 %v566
        %593 = vmatprep.subr.mxu0 0.0
        %594 = vmatpush1.msra.mxu0 %v567
        %595 = vmatprep.subr.mxu0 0.0
        %596 = vmatpush1.msra.mxu0 0.0
        %597 = vmatprep.subr.mxu0 0.0
        %598 = vmatpush1.msra.mxu0 0.0
        %599 = vmatprep.subr.mxu0 0.0
        %600 = vmatpush1.msra.mxu0 0.0
        %601 = vmatprep.subr.mxu0 0.0
        %602 = vmatpush1.msra.mxu0 0.0
        %603 = vmatprep.subr.mxu0 0.0
        %604 = vmatpush1.msra.mxu0 0.0
        %605 = vmatprep.subr.mxu0 0.0
        %606 = vmatpush1.msra.mxu0 0.0
        %607 = vmatprep.subr.mxu0 0.0
        %608 = vmatpush1.msra.mxu0 0.0
        %609 = vmatprep.subr.mxu0 0.0
        %610 = vmatpush1.msra.mxu0 0.0
        %611 = vmatprep.subr.mxu0 0.0
        %612 = vmatpush1.msra.mxu0 0.0
        %613 = vmatprep.subr.mxu0 0.0
        %614 = vmatpush1.msra.mxu0 0.0
        %615 = vmatprep.subr.mxu0 0.0
        %616 = vmatpush1.msra.mxu0 0.0
        %617 = vmatprep.subr.mxu0 0.0
        %618 = vmatpush1.msra.mxu0 0.0
        %619 = vmatprep.subr.mxu0 0.0
        %620 = vmatpush1.msra.mxu0 0.0
        %621 = vmatprep.subr.mxu0 0.0
        %622 = vmatpush1.msra.mxu0 0.0
        %623 = vmatprep.subr.mxu0 0.0
        %624 = vmatpush1.msra.mxu0 0.0
        %625 = vmatprep.subr.mxu0 0.0
        %626 = vmatpush1.msra.mxu0 0.0
        %627 = vmatprep.subr.mxu0 0.0
        %628 = vmatpush1.msra.mxu0 0.0
        %629 = vmatprep.subr.mxu0 0.0
        %630 = vmatpush1.msra.mxu0 0.0
        %631 = vmatprep.subr.mxu0 0.0
        %632 = vmatpush1.msra.mxu0 0.0
        %633 = vmatprep.subr.mxu0 0.0
        %634 = vmatpush1.msra.mxu0 0.0
        %635 = vmatprep.subr.mxu0 0.0
        %636 = vmatpush1.msra.mxu0 0.0
        %637 = vmatprep.subr.mxu0 0.0
        %638 = vmatpush1.msra.mxu0 0.0
        %639 = vmatprep.subr.mxu0 0.0
        %640 = vmatpush1.msra.mxu0 0.0
        %641 = vmatprep.subr.mxu0 0.0
        %642 = vmatpush1.msra.mxu0 0.0
        %643 = vmatprep.subr.mxu0 0.0
        %644 = vmatpush1.msra.mxu0 0.0
        %645 = vmatprep.subr.mxu0 0.0
        %646 = vmatpush1.msra.mxu0 0.0
        %647 = vmatprep.subr.mxu0 0.0
        %648 = vmatpush1.msra.mxu0 0.0
        %649 = vmatprep.subr.mxu0 0.0
        %650 = vmatpush1.msra.mxu0 0.0
        %651 = vmatprep.mubr.f32.mxu0 0.0
        %652 = vmatmul.mubr.f32.gmra.mrb[0].mxu0 %v576
        %v653 = vpop.f32.mrb[0].mxu0
        %v654 = vadd.f32 %v573, %v653
        %v655 = vpop.f32.mrb[0].mxu0
        %656 = vmatprep.mubr.f32.mxu0 0.0
        %657 = vmatmul.mubr.f32.gmra.mrb[0].mxu0 %v579
        %v658 = vpop.f32.mrb[0].mxu0
        %v659 = vadd.f32 %v573, %v658
        %v660 = vpop.f32.mrb[0].mxu0
        %661 = vmatprep.mubr.f32.mxu0 0.0
        %662 = vmatmul.mubr.f32.gmra.mrb[0].mxu0 %v582
        %v663 = vpop.f32.mrb[0].mxu0
        %v664 = vadd.f32 %v573, %v663
        %v665 = vpop.f32.mrb[0].mxu0
        %666 = vmatprep.mubr.f32.mxu0 0.0
        %667 = vmatmul.mubr.f32.gmra.mrb[0].mxu0 %v585
        %v668 = vpop.f32.mrb[0].mxu0
        %v669 = vadd.f32 %v573, %v668
        %v670 = vpop.f32.mrb[0].mxu0
        %671 = vdwg.mxu0
        %676 = vrot.lane.b32.xlu0 %v654, 120
        %v677 = vpop.permute.xlu0 %676
        %678 = vrot.lane.b32.xlu0 %v659, 120
        %v679 = vpop.permute.xlu0 %678
        %680 = vrot.lane.b32.xlu0 %v664, 120
        %v681 = vpop.permute.xlu0 %680
        %682 = vrot.lane.b32.xlu0 %v669, 120
        %v683 = vpop.permute.xlu0 %682
        %688 = vrot.lane.b32.xlu0 %v654, 112
        %v689 = vpop.permute.xlu0 %688
        %690 = vrot.lane.b32.xlu0 %v659, 112
        %v691 = vpop.permute.xlu0 %690
        %692 = vrot.lane.b32.xlu0 %v664, 112
        %v693 = vpop.permute.xlu0 %692
        %694 = vrot.lane.b32.xlu0 %v669, 112
        %v695 = vpop.permute.xlu0 %694
        %700 = vrot.lane.b32.xlu0 %v654, 104
        %v701 = vpop.permute.xlu0 %700
        %702 = vrot.lane.b32.xlu0 %v659, 104
        %v703 = vpop.permute.xlu0 %702
        %704 = vrot.lane.b32.xlu0 %v664, 104
        %v705 = vpop.permute.xlu0 %704
        %706 = vrot.lane.b32.xlu0 %v669, 104
        %v707 = vpop.permute.xlu0 %706
        %v712 = vmul.f32 %v654, 0.35355338
        %v713 = vmul.f32 %v659, 0.35355338
        %v714 = vmul.f32 %v664, 0.35355338
        %v715 = vmul.f32 %v669, 0.35355338
        %v716 = vmul.f32 %v677, 0.35355338
        %v717 = vmul.f32 %v679, 0.35355338
        %v718 = vmul.f32 %v681, 0.35355338
        %v719 = vmul.f32 %v683, 0.35355338
        %v720 = vmul.f32 %v689, 0.35355338
        %v721 = vmul.f32 %v691, 0.35355338
        %v722 = vmul.f32 %v693, 0.35355338
        %v723 = vmul.f32 %v695, 0.35355338
        %v724 = vmul.f32 %v701, 0.35355338
        %v725 = vmul.f32 %v703, 0.35355338
        %v726 = vmul.f32 %v705, 0.35355338
        %v727 = vmul.f32 %v707, 0.35355338
        %v728 = vld [vmem:[#allocation5] sm:$0xff]
        %v729 = vld [vmem:[#allocation5 + $0x8] sm:$0xff]
        %v730 = vld [vmem:[#allocation5 + $0x10] sm:$0xff]
        %v731 = vld [vmem:[#allocation5 + $0x18] sm:$0xff]
        %v732 = vld [vmem:[#allocation5 + $0x20] sm:$0xff]
        %v733 = vld [vmem:[#allocation5 + $0x28] sm:$0xff]
        %v734 = vld [vmem:[#allocation5 + $0x30] sm:$0xff]
        %v735 = vld [vmem:[#allocation5 + $0x38] sm:$0xff]
        %v736 = vld [vmem:[#allocation5 + $0x40] sm:$0xff]
        %v737 = vld [vmem:[#allocation5 + $0x48] sm:$0xff]
        %v738 = vld [vmem:[#allocation5 + $0x50] sm:$0xff]
        %v739 = vld [vmem:[#allocation5 + $0x58] sm:$0xff]
        %v740 = vld [vmem:[#allocation5 + $0x60] sm:$0xff]
        %v741 = vld [vmem:[#allocation5 + $0x68] sm:$0xff]
        %v742 = vld [vmem:[#allocation5 + $0x70] sm:$0xff]
        %v743 = vld [vmem:[#allocation5 + $0x78] sm:$0xff]
        %744 = vrot.lane.b32.xlu0 %v654, 96
        %v745 = vpop.permute.xlu0 %744
        %746 = vrot.lane.b32.xlu0 %v659, 96
        %v747 = vpop.permute.xlu0 %746
        %748 = vrot.lane.b32.xlu0 %v664, 96
        %v749 = vpop.permute.xlu0 %748
        %750 = vrot.lane.b32.xlu0 %v669, 96
        %v751 = vpop.permute.xlu0 %750
        %vm752 = vcmask 64512
        %v754 = vsel %vm752, %v712, 0
        %v757 = vsel %vm752, %v713, 0
        %v760 = vsel %vm752, %v714, 0
        %v763 = vsel %vm752, %v715, 0
        %v765 = vsel %vm752, %v745, 0
        %v767 = vsel %vm752, %v747, 0
        %v769 = vsel %vm752, %v749, 0
        %v771 = vsel %vm752, %v751, 0
        %773 = vmatprep.subr.mxu0 0.0
        %774 = vmatpush1.xpose.msra.mxu0 %v765
        %775 = vmatprep.subr.mxu0 0.0
        %776 = vmatpush1.xpose.msra.mxu0 %v767
        %777 = vmatprep.subr.mxu0 0.0
        %778 = vmatpush1.xpose.msra.mxu0 %v769
        %779 = vmatprep.subr.mxu0 0.0
        %780 = vmatpush1.xpose.msra.mxu0 %v771
        %781 = vmatprep.subr.mxu0 0.0
        %782 = vmatpush1.xpose.msra.mxu0 0.0
        %783 = vmatprep.subr.mxu0 0.0
        %784 = vmatpush1.xpose.msra.mxu0 0.0
        %785 = vmatprep.subr.mxu0 0.0
        %786 = vmatpush1.xpose.msra.mxu0 0.0
        %787 = vmatprep.subr.mxu0 0.0
        %788 = vmatpush1.xpose.msra.mxu0 0.0
        %789 = vmatprep.subr.mxu0 0.0
        %790 = vmatpush1.xpose.msra.mxu0 0.0
        %791 = vmatprep.subr.mxu0 0.0
        %792 = vmatpush1.xpose.msra.mxu0 0.0
        %793 = vmatprep.subr.mxu0 0.0
        %794 = vmatpush1.xpose.msra.mxu0 0.0
        %795 = vmatprep.subr.mxu0 0.0
        %796 = vmatpush1.xpose.msra.mxu0 0.0
        %797 = vmatprep.subr.mxu0 0.0
        %798 = vmatpush1.xpose.msra.mxu0 0.0
        %799 = vmatprep.subr.mxu0 0.0
        %800 = vmatpush1.xpose.msra.mxu0 0.0
        %801 = vmatprep.subr.mxu0 0.0
        %802 = vmatpush1.xpose.msra.mxu0 0.0
        %803 = vmatprep.subr.mxu0 0.0
        %804 = vmatpush1.xpose.msra.mxu0 0.0
        %805 = vmatprep.subr.mxu0 0.0
        %806 = vmatpush1.xpose.msra.mxu0 0.0
        %807 = vmatprep.subr.mxu0 0.0
        %808 = vmatpush1.xpose.msra.mxu0 0.0
        %809 = vmatprep.subr.mxu0 0.0
        %810 = vmatpush1.xpose.msra.mxu0 0.0
        %811 = vmatprep.subr.mxu0 0.0
        %812 = vmatpush1.xpose.msra.mxu0 0.0
        %813 = vmatprep.subr.mxu0 0.0
        %814 = vmatpush1.xpose.msra.mxu0 0.0
        %815 = vmatprep.subr.mxu0 0.0
        %816 = vmatpush1.xpose.msra.mxu0 0.0
        %817 = vmatprep.subr.mxu0 0.0
        %818 = vmatpush1.xpose.msra.mxu0 0.0
        %819 = vmatprep.subr.mxu0 0.0
        %820 = vmatpush1.xpose.msra.mxu0 0.0
        %821 = vmatprep.subr.mxu0 0.0
        %822 = vmatpush1.xpose.msra.mxu0 0.0
        %823 = vmatprep.subr.mxu0 0.0
        %824 = vmatpush1.xpose.msra.mxu0 0.0
        %825 = vmatprep.subr.mxu0 0.0
        %826 = vmatpush1.xpose.msra.mxu0 0.0
        %827 = vmatprep.subr.mxu0 0.0
        %828 = vmatpush1.xpose.msra.mxu0 0.0
        %829 = vmatprep.subr.mxu0 0.0
        %830 = vmatpush1.xpose.msra.mxu0 0.0
        %831 = vmatprep.subr.mxu0 0.0
        %832 = vmatpush1.xpose.msra.mxu0 0.0
        %833 = vmatprep.subr.mxu0 0.0
        %834 = vmatpush1.xpose.msra.mxu0 0.0
        %835 = vmatprep.subr.mxu0 0.0
        %836 = vmatpush1.xpose.msra.mxu0 0.0
        %837 = vmatprep.mubr.f32.mxu0 0.0
        %838 = vmatmul.mubr.f32.gmra.mrb[0].mxu0 %v754
        %v839 = vpop.f32.mrb[0].mxu0
        %v840 = vadd.f32 %v728, %v839
        %v841 = vpop.f32.mrb[0].mxu0
        %842 = vmatprep.mubr.f32.mxu0 0.0
        %843 = vmatmul.mubr.f32.gmra.mrb[0].mxu0 %v757
        %v844 = vpop.f32.mrb[0].mxu0
        %v845 = vadd.f32 %v729, %v844
        %v846 = vpop.f32.mrb[0].mxu0
        %847 = vmatprep.mubr.f32.mxu0 0.0
        %848 = vmatmul.mubr.f32.gmra.mrb[0].mxu0 %v760
        %v849 = vpop.f32.mrb[0].mxu0
        %v850 = vadd.f32 %v730, %v849
        %v851 = vpop.f32.mrb[0].mxu0
        %852 = vmatprep.mubr.f32.mxu0 0.0
        %853 = vmatmul.mubr.f32.gmra.mrb[0].mxu0 %v763
        %v854 = vpop.f32.mrb[0].mxu0
        %v855 = vadd.f32 %v731, %v854
        %v856 = vpop.f32.mrb[0].mxu0
        %857 = vdwg.mxu0
        %858 = vrot.lane.b32.xlu0 %v677, 96
        %v859 = vpop.permute.xlu0 %858
        %860 = vrot.lane.b32.xlu0 %v679, 96
        %v861 = vpop.permute.xlu0 %860
        %862 = vrot.lane.b32.xlu0 %v681, 96
        %v863 = vpop.permute.xlu0 %862
        %864 = vrot.lane.b32.xlu0 %v683, 96
        %v865 = vpop.permute.xlu0 %864
        %v867 = vsel %vm752, %v716, 0
        %v870 = vsel %vm752, %v717, 0
        %v873 = vsel %vm752, %v718, 0
        %v876 = vsel %vm752, %v719, 0
        %v878 = vsel %vm752, %v859, 0
        %v880 = vsel %vm752, %v861, 0
        %v882 = vsel %vm752, %v863, 0
        %v884 = vsel %vm752, %v865, 0
        %886 = vmatprep.subr.mxu0 0.0
        %887 = vmatpush1.xpose.msra.mxu0 %v878
        %888 = vmatprep.subr.mxu0 0.0
        %889 = vmatpush1.xpose.msra.mxu0 %v880
        %890 = vmatprep.subr.mxu0 0.0
        %891 = vmatpush1.xpose.msra.mxu0 %v882
        %892 = vmatprep.subr.mxu0 0.0
        %893 = vmatpush1.xpose.msra.mxu0 %v884
        %894 = vmatprep.subr.mxu0 0.0
        %895 = vmatpush1.xpose.msra.mxu0 0.0
        %896 = vmatprep.subr.mxu0 0.0
        %897 = vmatpush1.xpose.msra.mxu0 0.0
        %898 = vmatprep.subr.mxu0 0.0
        %899 = vmatpush1.xpose.msra.mxu0 0.0
        %900 = vmatprep.subr.mxu0 0.0
        %901 = vmatpush1.xpose.msra.mxu0 0.0
        %902 = vmatprep.subr.mxu0 0.0
        %903 = vmatpush1.xpose.msra.mxu0 0.0
        %904 = vmatprep.subr.mxu0 0.0
        %905 = vmatpush1.xpose.msra.mxu0 0.0
        %906 = vmatprep.subr.mxu0 0.0
        %907 = vmatpush1.xpose.msra.mxu0 0.0
        %908 = vmatprep.subr.mxu0 0.0
        %909 = vmatpush1.xpose.msra.mxu0 0.0
        %910 = vmatprep.subr.mxu0 0.0
        %911 = vmatpush1.xpose.msra.mxu0 0.0
        %912 = vmatprep.subr.mxu0 0.0
        %913 = vmatpush1.xpose.msra.mxu0 0.0
        %914 = vmatprep.subr.mxu0 0.0
        %915 = vmatpush1.xpose.msra.mxu0 0.0
        %916 = vmatprep.subr.mxu0 0.0
        %917 = vmatpush1.xpose.msra.mxu0 0.0
        %918 = vmatprep.subr.mxu0 0.0
        %919 = vmatpush1.xpose.msra.mxu0 0.0
        %920 = vmatprep.subr.mxu0 0.0
        %921 = vmatpush1.xpose.msra.mxu0 0.0
        %922 = vmatprep.subr.mxu0 0.0
        %923 = vmatpush1.xpose.msra.mxu0 0.0
        %924 = vmatprep.subr.mxu0 0.0
        %925 = vmatpush1.xpose.msra.mxu0 0.0
        %926 = vmatprep.subr.mxu0 0.0
        %927 = vmatpush1.xpose.msra.mxu0 0.0
        %928 = vmatprep.subr.mxu0 0.0
        %929 = vmatpush1.xpose.msra.mxu0 0.0
        %930 = vmatprep.subr.mxu0 0.0
        %931 = vmatpush1.xpose.msra.mxu0 0.0
        %932 = vmatprep.subr.mxu0 0.0
        %933 = vmatpush1.xpose.msra.mxu0 0.0
        %934 = vmatprep.subr.mxu0 0.0
        %935 = vmatpush1.xpose.msra.mxu0 0.0
        %936 = vmatprep.subr.mxu0 0.0
        %937 = vmatpush1.xpose.msra.mxu0 0.0
        %938 = vmatprep.subr.mxu0 0.0
        %939 = vmatpush1.xpose.msra.mxu0 0.0
        %940 = vmatprep.subr.mxu0 0.0
        %941 = vmatpush1.xpose.msra.mxu0 0.0
        %942 = vmatprep.subr.mxu0 0.0
        %943 = vmatpush1.xpose.msra.mxu0 0.0
        %944 = vmatprep.subr.mxu0 0.0
        %945 = vmatpush1.xpose.msra.mxu0 0.0
        %946 = vmatprep.subr.mxu0 0.0
        %947 = vmatpush1.xpose.msra.mxu0 0.0
        %948 = vmatprep.subr.mxu0 0.0
        %949 = vmatpush1.xpose.msra.mxu0 0.0
        %950 = vmatprep.mubr.f32.mxu0 0.0
        %951 = vmatmul.mubr.f32.gmra.mrb[0].mxu0 %v867
        %v952 = vpop.f32.mrb[0].mxu0
        %v953 = vadd.f32 %v732, %v952
        %v954 = vpop.f32.mrb[0].mxu0
        %955 = vmatprep.mubr.f32.mxu0 0.0
        %956 = vmatmul.mubr.f32.gmra.mrb[0].mxu0 %v870
        %v957 = vpop.f32.mrb[0].mxu0
        %v958 = vadd.f32 %v733, %v957
        %v959 = vpop.f32.mrb[0].mxu0
        %960 = vmatprep.mubr.f32.mxu0 0.0
        %961 = vmatmul.mubr.f32.gmra.mrb[0].mxu0 %v873
        %v962 = vpop.f32.mrb[0].mxu0
        %v963 = vadd.f32 %v734, %v962
        %v964 = vpop.f32.mrb[0].mxu0
        %965 = vmatprep.mubr.f32.mxu0 0.0
        %966 = vmatmul.mubr.f32.gmra.mrb[0].mxu0 %v876
        %v967 = vpop.f32.mrb[0].mxu0
        %v968 = vadd.f32 %v735, %v967
        %v969 = vpop.f32.mrb[0].mxu0
        %970 = vdwg.mxu0
        %971 = vrot.lane.b32.xlu0 %v689, 96
        %v972 = vpop.permute.xlu0 %971
        %973 = vrot.lane.b32.xlu0 %v691, 96
        %v974 = vpop.permute.xlu0 %973
        %975 = vrot.lane.b32.xlu0 %v693, 96
        %v976 = vpop.permute.xlu0 %975
        %977 = vrot.lane.b32.xlu0 %v695, 96
        %v978 = vpop.permute.xlu0 %977
        %v980 = vsel %vm752, %v720, 0
        %v983 = vsel %vm752, %v721, 0
        %v986 = vsel %vm752, %v722, 0
        %v989 = vsel %vm752, %v723, 0
        %v991 = vsel %vm752, %v972, 0
        %v993 = vsel %vm752, %v974, 0
        %v995 = vsel %vm752, %v976, 0
        %v997 = vsel %vm752, %v978, 0
        %999 = vmatprep.subr.mxu0 0.0
        %1000 = vmatpush1.xpose.msra.mxu0 %v991
        %1001 = vmatprep.subr.mxu0 0.0
        %1002 = vmatpush1.xpose.msra.mxu0 %v993
        %1003 = vmatprep.subr.mxu0 0.0
        %1004 = vmatpush1.xpose.msra.mxu0 %v995
        %1005 = vmatprep.subr.mxu0 0.0
        %1006 = vmatpush1.xpose.msra.mxu0 %v997
        %1007 = vmatprep.subr.mxu0 0.0
        %1008 = vmatpush1.xpose.msra.mxu0 0.0
        %1009 = vmatprep.subr.mxu0 0.0
        %1010 = vmatpush1.xpose.msra.mxu0 0.0
        %1011 = vmatprep.subr.mxu0 0.0
        %1012 = vmatpush1.xpose.msra.mxu0 0.0
        %1013 = vmatprep.subr.mxu0 0.0
        %1014 = vmatpush1.xpose.msra.mxu0 0.0
        %1015 = vmatprep.subr.mxu0 0.0
        %1016 = vmatpush1.xpose.msra.mxu0 0.0
        %1017 = vmatprep.subr.mxu0 0.0
        %1018 = vmatpush1.xpose.msra.mxu0 0.0
        %1019 = vmatprep.subr.mxu0 0.0
        %1020 = vmatpush1.xpose.msra.mxu0 0.0
        %1021 = vmatprep.subr.mxu0 0.0
        %1022 = vmatpush1.xpose.msra.mxu0 0.0
        %1023 = vmatprep.subr.mxu0 0.0
        %1024 = vmatpush1.xpose.msra.mxu0 0.0
        %1025 = vmatprep.subr.mxu0 0.0
        %1026 = vmatpush1.xpose.msra.mxu0 0.0
        %1027 = vmatprep.subr.mxu0 0.0
        %1028 = vmatpush1.xpose.msra.mxu0 0.0
        %1029 = vmatprep.subr.mxu0 0.0
        %1030 = vmatpush1.xpose.msra.mxu0 0.0
        %1031 = vmatprep.subr.mxu0 0.0
        %1032 = vmatpush1.xpose.msra.mxu0 0.0
        %1033 = vmatprep.subr.mxu0 0.0
        %1034 = vmatpush1.xpose.msra.mxu0 0.0
        %1035 = vmatprep.subr.mxu0 0.0
        %1036 = vmatpush1.xpose.msra.mxu0 0.0
        %1037 = vmatprep.subr.mxu0 0.0
        %1038 = vmatpush1.xpose.msra.mxu0 0.0
        %1039 = vmatprep.subr.mxu0 0.0
        %1040 = vmatpush1.xpose.msra.mxu0 0.0
        %1041 = vmatprep.subr.mxu0 0.0
        %1042 = vmatpush1.xpose.msra.mxu0 0.0
        %1043 = vmatprep.subr.mxu0 0.0
        %1044 = vmatpush1.xpose.msra.mxu0 0.0
        %1045 = vmatprep.subr.mxu0 0.0
        %1046 = vmatpush1.xpose.msra.mxu0 0.0
        %1047 = vmatprep.subr.mxu0 0.0
        %1048 = vmatpush1.xpose.msra.mxu0 0.0
        %1049 = vmatprep.subr.mxu0 0.0
        %1050 = vmatpush1.xpose.msra.mxu0 0.0
        %1051 = vmatprep.subr.mxu0 0.0
        %1052 = vmatpush1.xpose.msra.mxu0 0.0
        %1053 = vmatprep.subr.mxu0 0.0
        %1054 = vmatpush1.xpose.msra.mxu0 0.0
        %1055 = vmatprep.subr.mxu0 0.0
        %1056 = vmatpush1.xpose.msra.mxu0 0.0
        %1057 = vmatprep.subr.mxu0 0.0
        %1058 = vmatpush1.xpose.msra.mxu0 0.0
        %1059 = vmatprep.subr.mxu0 0.0
        %1060 = vmatpush1.xpose.msra.mxu0 0.0
        %1061 = vmatprep.subr.mxu0 0.0
        %1062 = vmatpush1.xpose.msra.mxu0 0.0
        %1063 = vmatprep.mubr.f32.mxu0 0.0
        %1064 = vmatmul.mubr.f32.gmra.mrb[0].mxu0 %v980
        %v1065 = vpop.f32.mrb[0].mxu0
        %v1066 = vadd.f32 %v736, %v1065
        %v1067 = vpop.f32.mrb[0].mxu0
        %1068 = vmatprep.mubr.f32.mxu0 0.0
        %1069 = vmatmul.mubr.f32.gmra.mrb[0].mxu0 %v983
        %v1070 = vpop.f32.mrb[0].mxu0
        %v1071 = vadd.f32 %v737, %v1070
        %v1072 = vpop.f32.mrb[0].mxu0
        %1073 = vmatprep.mubr.f32.mxu0 0.0
        %1074 = vmatmul.mubr.f32.gmra.mrb[0].mxu0 %v986
        %v1075 = vpop.f32.mrb[0].mxu0
        %v1076 = vadd.f32 %v738, %v1075
        %v1077 = vpop.f32.mrb[0].mxu0
        %1078 = vmatprep.mubr.f32.mxu0 0.0
        %1079 = vmatmul.mubr.f32.gmra.mrb[0].mxu0 %v989
        %v1080 = vpop.f32.mrb[0].mxu0
        %v1081 = vadd.f32 %v739, %v1080
        %v1082 = vpop.f32.mrb[0].mxu0
        %1083 = vdwg.mxu0
        %1084 = vrot.lane.b32.xlu0 %v701, 96
        %v1085 = vpop.permute.xlu0 %1084
        %1086 = vrot.lane.b32.xlu0 %v703, 96
        %v1087 = vpop.permute.xlu0 %1086
        %1088 = vrot.lane.b32.xlu0 %v705, 96
        %v1089 = vpop.permute.xlu0 %1088
        %1090 = vrot.lane.b32.xlu0 %v707, 96
        %v1091 = vpop.permute.xlu0 %1090
        %v1093 = vsel %vm752, %v724, 0
        %v1096 = vsel %vm752, %v725, 0
        %v1099 = vsel %vm752, %v726, 0
        %v1102 = vsel %vm752, %v727, 0
        %v1104 = vsel %vm752, %v1085, 0
        %v1106 = vsel %vm752, %v1087, 0
        %v1108 = vsel %vm752, %v1089, 0
        %v1110 = vsel %vm752, %v1091, 0
        %1112 = vmatprep.subr.mxu0 0.0
        %1113 = vmatpush1.xpose.msra.mxu0 %v1104
        %1114 = vmatprep.subr.mxu0 0.0
        %1115 = vmatpush1.xpose.msra.mxu0 %v1106
        %1116 = vmatprep.subr.mxu0 0.0
        %1117 = vmatpush1.xpose.msra.mxu0 %v1108
        %1118 = vmatprep.subr.mxu0 0.0
        %1119 = vmatpush1.xpose.msra.mxu0 %v1110
        %1120 = vmatprep.subr.mxu0 0.0
        %1121 = vmatpush1.xpose.msra.mxu0 0.0
        %1122 = vmatprep.subr.mxu0 0.0
        %1123 = vmatpush1.xpose.msra.mxu0 0.0
        %1124 = vmatprep.subr.mxu0 0.0
        %1125 = vmatpush1.xpose.msra.mxu0 0.0
        %1126 = vmatprep.subr.mxu0 0.0
        %1127 = vmatpush1.xpose.msra.mxu0 0.0
        %1128 = vmatprep.subr.mxu0 0.0
        %1129 = vmatpush1.xpose.msra.mxu0 0.0
        %1130 = vmatprep.subr.mxu0 0.0
        %1131 = vmatpush1.xpose.msra.mxu0 0.0
        %1132 = vmatprep.subr.mxu0 0.0
        %1133 = vmatpush1.xpose.msra.mxu0 0.0
        %1134 = vmatprep.subr.mxu0 0.0
        %1135 = vmatpush1.xpose.msra.mxu0 0.0
        %1136 = vmatprep.subr.mxu0 0.0
        %1137 = vmatpush1.xpose.msra.mxu0 0.0
        %1138 = vmatprep.subr.mxu0 0.0
        %1139 = vmatpush1.xpose.msra.mxu0 0.0
        %1140 = vmatprep.subr.mxu0 0.0
        %1141 = vmatpush1.xpose.msra.mxu0 0.0
        %1142 = vmatprep.subr.mxu0 0.0
        %1143 = vmatpush1.xpose.msra.mxu0 0.0
        %1144 = vmatprep.subr.mxu0 0.0
        %1145 = vmatpush1.xpose.msra.mxu0 0.0
        %1146 = vmatprep.subr.mxu0 0.0
        %1147 = vmatpush1.xpose.msra.mxu0 0.0
        %1148 = vmatprep.subr.mxu0 0.0
        %1149 = vmatpush1.xpose.msra.mxu0 0.0
        %1150 = vmatprep.subr.mxu0 0.0
        %1151 = vmatpush1.xpose.msra.mxu0 0.0
        %1152 = vmatprep.subr.mxu0 0.0
        %1153 = vmatpush1.xpose.msra.mxu0 0.0
        %1154 = vmatprep.subr.mxu0 0.0
        %1155 = vmatpush1.xpose.msra.mxu0 0.0
        %1156 = vmatprep.subr.mxu0 0.0
        %1157 = vmatpush1.xpose.msra.mxu0 0.0
        %1158 = vmatprep.subr.mxu0 0.0
        %1159 = vmatpush1.xpose.msra.mxu0 0.0
        %1160 = vmatprep.subr.mxu0 0.0
        %1161 = vmatpush1.xpose.msra.mxu0 0.0
        %1162 = vmatprep.subr.mxu0 0.0
        %1163 = vmatpush1.xpose.msra.mxu0 0.0
        %1164 = vmatprep.subr.mxu0 0.0
        %1165 = vmatpush1.xpose.msra.mxu0 0.0
        %1166 = vmatprep.subr.mxu0 0.0
        %1167 = vmatpush1.xpose.msra.mxu0 0.0
        %1168 = vmatprep.subr.mxu0 0.0
        %1169 = vmatpush1.xpose.msra.mxu0 0.0
        %1170 = vmatprep.subr.mxu0 0.0
        %1171 = vmatpush1.xpose.msra.mxu0 0.0
        %1172 = vmatprep.subr.mxu0 0.0
        %1173 = vmatpush1.xpose.msra.mxu0 0.0
        %1174 = vmatprep.subr.mxu0 0.0
        %1175 = vmatpush1.xpose.msra.mxu0 0.0
        %1176 = vmatprep.mubr.f32.mxu0 0.0
        %1177 = vmatmul.mubr.f32.gmra.mrb[0].mxu0 %v1093
        %v1178 = vpop.f32.mrb[0].mxu0
        %v1179 = vadd.f32 %v740, %v1178
        %v1180 = vpop.f32.mrb[0].mxu0
        %1181 = vmatprep.mubr.f32.mxu0 0.0
        %1182 = vmatmul.mubr.f32.gmra.mrb[0].mxu0 %v1096
        %v1183 = vpop.f32.mrb[0].mxu0
        %v1184 = vadd.f32 %v741, %v1183
        %v1185 = vpop.f32.mrb[0].mxu0
        %1186 = vmatprep.mubr.f32.mxu0 0.0
        %1187 = vmatmul.mubr.f32.gmra.mrb[0].mxu0 %v1099
        %v1188 = vpop.f32.mrb[0].mxu0
        %v1189 = vadd.f32 %v742, %v1188
        %v1190 = vpop.f32.mrb[0].mxu0
        %1191 = vmatprep.mubr.f32.mxu0 0.0
        %1192 = vmatmul.mubr.f32.gmra.mrb[0].mxu0 %v1102
        %v1193 = vpop.f32.mrb[0].mxu0
        %v1194 = vadd.f32 %v743, %v1193
        %v1195 = vpop.f32.mrb[0].mxu0
        %1196 = vdwg.mxu0
        %v1197 = vld [vmem:[%s476] sm:$0xff]
        %v1198 = vld [vmem:[%s476 + $0x8] sm:$0xff]
        %v1199 = vld [vmem:[%s476 + $0x10] sm:$0xff]
        %v1200 = vld [vmem:[%s476 + $0x18] sm:$0xff]
        %v1201 = vld [vmem:[%s482] sm:$0x1]
        %1203 = vset.pattern.permute.xlu0 0
        %1204 = vperm.xlu0 %1203, %v1197
        %v1205 = vpop.permute.xlu0 %1204
        %1208 = vset.pattern.permute.xlu0 0
        %1209 = vperm.xlu0 %1208, %v1198
        %v1210 = vpop.permute.xlu0 %1209
        %1213 = vset.pattern.permute.xlu0 0
        %1214 = vperm.xlu0 %1213, %v1199
        %v1215 = vpop.permute.xlu0 %1214
        %1218 = vset.pattern.permute.xlu0 0
        %1219 = vperm.xlu0 %1218, %v1200
        %v1220 = vpop.permute.xlu0 %1219
        %v1223 = vlaneseq
        %v1224 = vshrl.u32 %v1223, 7
        %v1225 = vsub.s32 0, %v1224
        %v1226 = vrot.slane %v1201, %v1225
        %vm1228 = vcmp.ne.f32.partialorder %v1205, %v1226
        %vm1229 = vcmp.ne.f32.partialorder %v1210, %v1226
        %vm1230 = vcmp.ne.f32.partialorder %v1215, %v1226
        %vm1231 = vcmp.ne.f32.partialorder %v1220, %v1226
        %v1232 = vsel %vm1228, -100.0, 0.0
        %v1233 = vsel %vm1229, -100.0, 0.0
        %v1234 = vsel %vm1230, -100.0, 0.0
        %v1235 = vsel %vm1231, -100.0, 0.0
        %v1236 = vadd.f32 %v840, %v1232
        %v1237 = vadd.f32 %v845, %v1233
        %v1238 = vadd.f32 %v850, %v1234
        %v1239 = vadd.f32 %v855, %v1235
        %v1240 = vadd.f32 %v953, %v1232
        %v1241 = vadd.f32 %v958, %v1233
        %v1242 = vadd.f32 %v963, %v1234
        %v1243 = vadd.f32 %v968, %v1235
        %v1244 = vadd.f32 %v1066, %v1232
        %v1245 = vadd.f32 %v1071, %v1233
        %v1246 = vadd.f32 %v1076, %v1234
        %v1247 = vadd.f32 %v1081, %v1235
        %v1248 = vadd.f32 %v1179, %v1232
        %v1249 = vadd.f32 %v1184, %v1233
        %v1250 = vadd.f32 %v1189, %v1234
        %v1251 = vadd.f32 %v1194, %v1235
        %v1252 = vsel %vm488, %v1236, -inf
        %1253 = vmax.xlane.f32.xlu0 %v1252
        %v1254 = vpop.xlane.xlu0 %1253
        %v1255 = vsel %vm488, %v1237, -inf
        %1256 = vmax.xlane.f32.xlu0 %v1255
        %v1257 = vpop.xlane.xlu0 %1256
        %v1258 = vsel %vm488, %v1238, -inf
        %1259 = vmax.xlane.f32.xlu0 %v1258
        %v1260 = vpop.xlane.xlu0 %1259
        %v1261 = vsel %vm488, %v1239, -inf
        %1262 = vmax.xlane.f32.xlu0 %v1261
        %v1263 = vpop.xlane.xlu0 %1262
        %v1264 = vsel %vm488, %v1240, -inf
        %1265 = vmax.xlane.f32.xlu0 %v1264
        %v1266 = vpop.xlane.xlu0 %1265
        %v1267 = vsel %vm488, %v1241, -inf
        %1268 = vmax.xlane.f32.xlu0 %v1267
        %v1269 = vpop.xlane.xlu0 %1268
        %v1270 = vsel %vm488, %v1242, -inf
        %1271 = vmax.xlane.f32.xlu0 %v1270
        %v1272 = vpop.xlane.xlu0 %1271
        %v1273 = vsel %vm488, %v1243, -inf
        %1274 = vmax.xlane.f32.xlu0 %v1273
        %v1275 = vpop.xlane.xlu0 %1274
        %v1276 = vsel %vm488, %v1244, -inf
        %1277 = vmax.xlane.f32.xlu0 %v1276
        %v1278 = vpop.xlane.xlu0 %1277
        %v1279 = vsel %vm488, %v1245, -inf
        %1280 = vmax.xlane.f32.xlu0 %v1279
        %v1281 = vpop.xlane.xlu0 %1280
        %v1282 = vsel %vm488, %v1246, -inf
        %1283 = vmax.xlane.f32.xlu0 %v1282
        %v1284 = vpop.xlane.xlu0 %1283
        %v1285 = vsel %vm488, %v1247, -inf
        %1286 = vmax.xlane.f32.xlu0 %v1285
        %v1287 = vpop.xlane.xlu0 %1286
        %v1288 = vsel %vm488, %v1248, -inf
        %1289 = vmax.xlane.f32.xlu0 %v1288
        %v1290 = vpop.xlane.xlu0 %1289
        %v1291 = vsel %vm488, %v1249, -inf
        %1292 = vmax.xlane.f32.xlu0 %v1291
        %v1293 = vpop.xlane.xlu0 %1292
        %v1294 = vsel %vm488, %v1250, -inf
        %1295 = vmax.xlane.f32.xlu0 %v1294
        %v1296 = vpop.xlane.xlu0 %1295
        %v1297 = vsel %vm488, %v1251, -inf
        %1298 = vmax.xlane.f32.xlu0 %v1297
        %v1299 = vpop.xlane.xlu0 %1298
        %v1300 = vsub.f32 %v1236, %v1254
        %v1301 = vsub.f32 %v1237, %v1257
        %v1302 = vsub.f32 %v1238, %v1260
        %v1303 = vsub.f32 %v1239, %v1263
        %v1304 = vsub.f32 %v1240, %v1266
        %v1305 = vsub.f32 %v1241, %v1269
        %v1306 = vsub.f32 %v1242, %v1272
        %v1307 = vsub.f32 %v1243, %v1275
        %v1308 = vsub.f32 %v1244, %v1278
        %v1309 = vsub.f32 %v1245, %v1281
        %v1310 = vsub.f32 %v1246, %v1284
        %v1311 = vsub.f32 %v1247, %v1287
        %v1312 = vsub.f32 %v1248, %v1290
        %v1313 = vsub.f32 %v1249, %v1293
        %v1314 = vsub.f32 %v1250, %v1296
        %v1315 = vsub.f32 %v1251, %v1299
        %v1316 = vmul.f32 %v1300, 1.442695
        %v1317 = vpow.pop %v1316
        %v1318 = vmul.f32 %v1301, 1.442695
        %v1319 = vpow.pop %v1318
        %v1320 = vmul.f32 %v1302, 1.442695
        %v1321 = vpow.pop %v1320
        %v1322 = vmul.f32 %v1303, 1.442695
        %v1323 = vpow.pop %v1322
        %v1324 = vmul.f32 %v1304, 1.442695
        %v1325 = vpow.pop %v1324
        %v1326 = vmul.f32 %v1305, 1.442695
        %v1327 = vpow.pop %v1326
        %v1328 = vmul.f32 %v1306, 1.442695
        %v1329 = vpow.pop %v1328
        %v1330 = vmul.f32 %v1307, 1.442695
        %v1331 = vpow.pop %v1330
        %v1332 = vmul.f32 %v1308, 1.442695
        %v1333 = vpow.pop %v1332
        %v1334 = vmul.f32 %v1309, 1.442695
        %v1335 = vpow.pop %v1334
        %v1336 = vmul.f32 %v1310, 1.442695
        %v1337 = vpow.pop %v1336
        %v1338 = vmul.f32 %v1311, 1.442695
        %v1339 = vpow.pop %v1338
        %v1340 = vmul.f32 %v1312, 1.442695
        %v1341 = vpow.pop %v1340
        %v1342 = vmul.f32 %v1313, 1.442695
        %v1343 = vpow.pop %v1342
        %v1344 = vmul.f32 %v1314, 1.442695
        %v1345 = vpow.pop %v1344
        %v1346 = vmul.f32 %v1315, 1.442695
        %v1347 = vpow.pop %v1346
        %v1348 = vsel %vm488, %v1317, 0.0
        %1349 = vadd.xlane.f32.xlu0 %v1348
        %v1350 = vpop.xlane.xlu0 %1349
        %v1351 = vsel %vm488, %v1319, 0.0
        %1352 = vadd.xlane.f32.xlu0 %v1351
        %v1353 = vpop.xlane.xlu0 %1352
        %v1354 = vsel %vm488, %v1321, 0.0
        %1355 = vadd.xlane.f32.xlu0 %v1354
        %v1356 = vpop.xlane.xlu0 %1355
        %v1357 = vsel %vm488, %v1323, 0.0
        %1358 = vadd.xlane.f32.xlu0 %v1357
        %v1359 = vpop.xlane.xlu0 %1358
        %v1360 = vsel %vm488, %v1325, 0.0
        %1361 = vadd.xlane.f32.xlu0 %v1360
        %v1362 = vpop.xlane.xlu0 %1361
        %v1363 = vsel %vm488, %v1327, 0.0
        %1364 = vadd.xlane.f32.xlu0 %v1363
        %v1365 = vpop.xlane.xlu0 %1364
        %v1366 = vsel %vm488, %v1329, 0.0
        %1367 = vadd.xlane.f32.xlu0 %v1366
        %v1368 = vpop.xlane.xlu0 %1367
        %v1369 = vsel %vm488, %v1331, 0.0
        %1370 = vadd.xlane.f32.xlu0 %v1369
        %v1371 = vpop.xlane.xlu0 %1370
        %v1372 = vsel %vm488, %v1333, 0.0
        %1373 = vadd.xlane.f32.xlu0 %v1372
        %v1374 = vpop.xlane.xlu0 %1373
        %v1375 = vsel %vm488, %v1335, 0.0
        %1376 = vadd.xlane.f32.xlu0 %v1375
        %v1377 = vpop.xlane.xlu0 %1376
        %v1378 = vsel %vm488, %v1337, 0.0
        %1379 = vadd.xlane.f32.xlu0 %v1378
        %v1380 = vpop.xlane.xlu0 %1379
        %v1381 = vsel %vm488, %v1339, 0.0
        %1382 = vadd.xlane.f32.xlu0 %v1381
        %v1383 = vpop.xlane.xlu0 %1382
        %v1384 = vsel %vm488, %v1341, 0.0
        %1385 = vadd.xlane.f32.xlu0 %v1384
        %v1386 = vpop.xlane.xlu0 %1385
        %v1387 = vsel %vm488, %v1343, 0.0
        %1388 = vadd.xlane.f32.xlu0 %v1387
        %v1389 = vpop.xlane.xlu0 %1388
        %v1390 = vsel %vm488, %v1345, 0.0
        %1391 = vadd.xlane.f32.xlu0 %v1390
        %v1392 = vpop.xlane.xlu0 %1391
        %v1393 = vsel %vm488, %v1347, 0.0
        %1394 = vadd.xlane.f32.xlu0 %v1393
        %v1395 = vpop.xlane.xlu0 %1394
        %v1396 = vrcp.pop %v1350
        %v1397 = vrcp.pop %v1353
        %v1398 = vrcp.pop %v1356
        %v1399 = vrcp.pop %v1359
        %v1400 = vrcp.pop %v1362
        %v1401 = vrcp.pop %v1365
        %v1402 = vrcp.pop %v1368
        %v1403 = vrcp.pop %v1371
        %v1404 = vrcp.pop %v1374
        %v1405 = vrcp.pop %v1377
        %v1406 = vrcp.pop %v1380
        %v1407 = vrcp.pop %v1383
        %v1408 = vrcp.pop %v1386
        %v1409 = vrcp.pop %v1389
        %v1410 = vrcp.pop %v1392
        %v1411 = vrcp.pop %v1395
        %v1412 = vmul.f32 %v1350, %v1396
        %v1413 = vmul.f32 %v1353, %v1397
        %v1414 = vmul.f32 %v1356, %v1398
        %v1415 = vmul.f32 %v1359, %v1399
        %v1416 = vmul.f32 %v1362, %v1400
        %v1417 = vmul.f32 %v1365, %v1401
        %v1418 = vmul.f32 %v1368, %v1402
        %v1419 = vmul.f32 %v1371, %v1403
        %v1420 = vmul.f32 %v1374, %v1404
        %v1421 = vmul.f32 %v1377, %v1405
        %v1422 = vmul.f32 %v1380, %v1406
        %v1423 = vmul.f32 %v1383, %v1407
        %v1424 = vmul.f32 %v1386, %v1408
        %v1425 = vmul.f32 %v1389, %v1409
        %v1426 = vmul.f32 %v1392, %v1410
        %v1427 = vmul.f32 %v1395, %v1411
        %v1428 = vsub.f32 2.0, %v1412
        %v1429 = vsub.f32 2.0, %v1413
        %v1430 = vsub.f32 2.0, %v1414
        %v1431 = vsub.f32 2.0, %v1415
        %v1432 = vsub.f32 2.0, %v1416
        %v1433 = vsub.f32 2.0, %v1417
        %v1434 = vsub.f32 2.0, %v1418
        %v1435 = vsub.f32 2.0, %v1419
        %v1436 = vsub.f32 2.0, %v1420
        %v1437 = vsub.f32 2.0, %v1421
        %v1438 = vsub.f32 2.0, %v1422
        %v1439 = vsub.f32 2.0, %v1423
        %v1440 = vsub.f32 2.0, %v1424
        %v1441 = vsub.f32 2.0, %v1425
        %v1442 = vsub.f32 2.0, %v1426
        %v1443 = vsub.f32 2.0, %v1427
        %v1444 = vmul.f32 %v1396, %v1428
        %v1445 = vmul.f32 %v1397, %v1429
        %v1446 = vmul.f32 %v1398, %v1430
        %v1447 = vmul.f32 %v1399, %v1431
        %v1448 = vmul.f32 %v1400, %v1432
        %v1449 = vmul.f32 %v1401, %v1433
        %v1450 = vmul.f32 %v1402, %v1434
        %v1451 = vmul.f32 %v1403, %v1435
        %v1452 = vmul.f32 %v1404, %v1436
        %v1453 = vmul.f32 %v1405, %v1437
        %v1454 = vmul.f32 %v1406, %v1438
        %v1455 = vmul.f32 %v1407, %v1439
        %v1456 = vmul.f32 %v1408, %v1440
        %v1457 = vmul.f32 %v1409, %v1441
        %v1458 = vmul.f32 %v1410, %v1442
        %v1459 = vmul.f32 %v1411, %v1443
        %v1460 = vmul.f32 %v1317, %v1444
        %v1461 = vmul.f32 %v1319, %v1445
        %v1462 = vmul.f32 %v1321, %v1446
        %v1463 = vmul.f32 %v1323, %v1447
        %v1464 = vmul.f32 %v1325, %v1448
        %v1465 = vmul.f32 %v1327, %v1449
        %v1466 = vmul.f32 %v1329, %v1450
        %v1467 = vmul.f32 %v1331, %v1451
        %v1468 = vmul.f32 %v1333, %v1452
        %v1469 = vmul.f32 %v1335, %v1453
        %v1470 = vmul.f32 %v1337, %v1454
        %v1471 = vmul.f32 %v1339, %v1455
        %v1472 = vmul.f32 %v1341, %v1456
        %v1473 = vmul.f32 %v1343, %v1457
        %v1474 = vmul.f32 %v1345, %v1458
        %v1475 = vmul.f32 %v1347, %v1459
        %1476 = vrot.lane.b32.xlu0 %v654, 64
        %v1477 = vpop.permute.xlu0 %1476
        %1478 = vrot.lane.b32.xlu0 %v659, 64
        %v1479 = vpop.permute.xlu0 %1478
        %1480 = vrot.lane.b32.xlu0 %v664, 64
        %v1481 = vpop.permute.xlu0 %1480
        %1482 = vrot.lane.b32.xlu0 %v669, 64
        %v1483 = vpop.permute.xlu0 %1482
        %v1489 = vsel %vm488, %v1460, 0
        %v1492 = vsel %vm488, %v1461, 0
        %v1495 = vsel %vm488, %v1462, 0
        %v1498 = vsel %vm488, %v1463, 0
        %1500 = vmatprep.subr.mxu0 0.0
        %1501 = vmatpush1.msra.mxu0 %v1477
        %1502 = vmatprep.subr.mxu0 0.0
        %1503 = vmatpush1.msra.mxu0 %v1479
        %1504 = vmatprep.subr.mxu0 0.0
        %1505 = vmatpush1.msra.mxu0 %v1481
        %1506 = vmatprep.subr.mxu0 0.0
        %1507 = vmatpush1.msra.mxu0 %v1483
        %1508 = vmatprep.subr.mxu0 0.0
        %1509 = vmatpush1.msra.mxu0 0.0
        %1510 = vmatprep.subr.mxu0 0.0
        %1511 = vmatpush1.msra.mxu0 0.0
        %1512 = vmatprep.subr.mxu0 0.0
        %1513 = vmatpush1.msra.mxu0 0.0
        %1514 = vmatprep.subr.mxu0 0.0
        %1515 = vmatpush1.msra.mxu0 0.0
        %1516 = vmatprep.subr.mxu0 0.0
        %1517 = vmatpush1.msra.mxu0 0.0
        %1518 = vmatprep.subr.mxu0 0.0
        %1519 = vmatpush1.msra.mxu0 0.0
        %1520 = vmatprep.subr.mxu0 0.0
        %1521 = vmatpush1.msra.mxu0 0.0
        %1522 = vmatprep.subr.mxu0 0.0
        %1523 = vmatpush1.msra.mxu0 0.0
        %1524 = vmatprep.subr.mxu0 0.0
        %1525 = vmatpush1.msra.mxu0 0.0
        %1526 = vmatprep.subr.mxu0 0.0
        %1527 = vmatpush1.msra.mxu0 0.0
        %1528 = vmatprep.subr.mxu0 0.0
        %1529 = vmatpush1.msra.mxu0 0.0
        %1530 = vmatprep.subr.mxu0 0.0
        %1531 = vmatpush1.msra.mxu0 0.0
        %1532 = vmatprep.subr.mxu0 0.0
        %1533 = vmatpush1.msra.mxu0 0.0
        %1534 = vmatprep.subr.mxu0 0.0
        %1535 = vmatpush1.msra.mxu0 0.0
        %1536 = vmatprep.subr.mxu0 0.0
        %1537 = vmatpush1.msra.mxu0 0.0
        %1538 = vmatprep.subr.mxu0 0.0
        %1539 = vmatpush1.msra.mxu0 0.0
        %1540 = vmatprep.subr.mxu0 0.0
        %1541 = vmatpush1.msra.mxu0 0.0
        %1542 = vmatprep.subr.mxu0 0.0
        %1543 = vmatpush1.msra.mxu0 0.0
        %1544 = vmatprep.subr.mxu0 0.0
        %1545 = vmatpush1.msra.mxu0 0.0
        %1546 = vmatprep.subr.mxu0 0.0
        %1547 = vmatpush1.msra.mxu0 0.0
        %1548 = vmatprep.subr.mxu0 0.0
        %1549 = vmatpush1.msra.mxu0 0.0
        %1550 = vmatprep.subr.mxu0 0.0
        %1551 = vmatpush1.msra.mxu0 0.0
        %1552 = vmatprep.subr.mxu0 0.0
        %1553 = vmatpush1.msra.mxu0 0.0
        %1554 = vmatprep.subr.mxu0 0.0
        %1555 = vmatpush1.msra.mxu0 0.0
        %1556 = vmatprep.subr.mxu0 0.0
        %1557 = vmatpush1.msra.mxu0 0.0
        %1558 = vmatprep.subr.mxu0 0.0
        %1559 = vmatpush1.msra.mxu0 0.0
        %1560 = vmatprep.subr.mxu0 0.0
        %1561 = vmatpush1.msra.mxu0 0.0
        %1562 = vmatprep.subr.mxu0 0.0
        %1563 = vmatpush1.msra.mxu0 0.0
        %1564 = vmatprep.mubr.f32.mxu0 0.0
        %1565 = vmatmul.mubr.f32.gmra.mrb[0].mxu0 %v1489
        %v1566 = vpop.f32.mrb[0].mxu0
        %v1567 = vadd.f32 0.0, %v1566
        %v1568 = vpop.f32.mrb[0].mxu0
        %1569 = vmatprep.mubr.f32.mxu0 0.0
        %1570 = vmatmul.mubr.f32.gmra.mrb[0].mxu0 %v1492
        %v1571 = vpop.f32.mrb[0].mxu0
        %v1572 = vadd.f32 0.0, %v1571
        %v1573 = vpop.f32.mrb[0].mxu0
        %1574 = vmatprep.mubr.f32.mxu0 0.0
        %1575 = vmatmul.mubr.f32.gmra.mrb[0].mxu0 %v1495
        %v1576 = vpop.f32.mrb[0].mxu0
        %v1577 = vadd.f32 0.0, %v1576
        %v1578 = vpop.f32.mrb[0].mxu0
        %1579 = vmatprep.mubr.f32.mxu0 0.0
        %1580 = vmatmul.mubr.f32.gmra.mrb[0].mxu0 %v1498
        %v1581 = vpop.f32.mrb[0].mxu0
        %v1582 = vadd.f32 0.0, %v1581
        %v1583 = vpop.f32.mrb[0].mxu0
        %1584 = vdwg.mxu0
        %1585 = vrot.lane.b32.xlu0 %v677, 64
        %v1586 = vpop.permute.xlu0 %1585
        %1587 = vrot.lane.b32.xlu0 %v679, 64
        %v1588 = vpop.permute.xlu0 %1587
        %1589 = vrot.lane.b32.xlu0 %v681, 64
        %v1590 = vpop.permute.xlu0 %1589
        %1591 = vrot.lane.b32.xlu0 %v683, 64
        %v1592 = vpop.permute.xlu0 %1591
        %v1598 = vsel %vm488, %v1464, 0
        %v1601 = vsel %vm488, %v1465, 0
        %v1604 = vsel %vm488, %v1466, 0
        %v1607 = vsel %vm488, %v1467, 0
        %1609 = vmatprep.subr.mxu0 0.0
        %1610 = vmatpush1.msra.mxu0 %v1586
        %1611 = vmatprep.subr.mxu0 0.0
        %1612 = vmatpush1.msra.mxu0 %v1588
        %1613 = vmatprep.subr.mxu0 0.0
        %1614 = vmatpush1.msra.mxu0 %v1590
        %1615 = vmatprep.subr.mxu0 0.0
        %1616 = vmatpush1.msra.mxu0 %v1592
        %1617 = vmatprep.subr.mxu0 0.0
        %1618 = vmatpush1.msra.mxu0 0.0
        %1619 = vmatprep.subr.mxu0 0.0
        %1620 = vmatpush1.msra.mxu0 0.0
        %1621 = vmatprep.subr.mxu0 0.0
        %1622 = vmatpush1.msra.mxu0 0.0
        %1623 = vmatprep.subr.mxu0 0.0
        %1624 = vmatpush1.msra.mxu0 0.0
        %1625 = vmatprep.subr.mxu0 0.0
        %1626 = vmatpush1.msra.mxu0 0.0
        %1627 = vmatprep.subr.mxu0 0.0
        %1628 = vmatpush1.msra.mxu0 0.0
        %1629 = vmatprep.subr.mxu0 0.0
        %1630 = vmatpush1.msra.mxu0 0.0
        %1631 = vmatprep.subr.mxu0 0.0
        %1632 = vmatpush1.msra.mxu0 0.0
        %1633 = vmatprep.subr.mxu0 0.0
        %1634 = vmatpush1.msra.mxu0 0.0
        %1635 = vmatprep.subr.mxu0 0.0
        %1636 = vmatpush1.msra.mxu0 0.0
        %1637 = vmatprep.subr.mxu0 0.0
        %1638 = vmatpush1.msra.mxu0 0.0
        %1639 = vmatprep.subr.mxu0 0.0
        %1640 = vmatpush1.msra.mxu0 0.0
        %1641 = vmatprep.subr.mxu0 0.0
        %1642 = vmatpush1.msra.mxu0 0.0
        %1643 = vmatprep.subr.mxu0 0.0
        %1644 = vmatpush1.msra.mxu0 0.0
        %1645 = vmatprep.subr.mxu0 0.0
        %1646 = vmatpush1.msra.mxu0 0.0
        %1647 = vmatprep.subr.mxu0 0.0
        %1648 = vmatpush1.msra.mxu0 0.0
        %1649 = vmatprep.subr.mxu0 0.0
        %1650 = vmatpush1.msra.mxu0 0.0
        %1651 = vmatprep.subr.mxu0 0.0
        %1652 = vmatpush1.msra.mxu0 0.0
        %1653 = vmatprep.subr.mxu0 0.0
        %1654 = vmatpush1.msra.mxu0 0.0
        %1655 = vmatprep.subr.mxu0 0.0
        %1656 = vmatpush1.msra.mxu0 0.0
        %1657 = vmatprep.subr.mxu0 0.0
        %1658 = vmatpush1.msra.mxu0 0.0
        %1659 = vmatprep.subr.mxu0 0.0
        %1660 = vmatpush1.msra.mxu0 0.0
        %1661 = vmatprep.subr.mxu0 0.0
        %1662 = vmatpush1.msra.mxu0 0.0
        %1663 = vmatprep.subr.mxu0 0.0
        %1664 = vmatpush1.msra.mxu0 0.0
        %1665 = vmatprep.subr.mxu0 0.0
        %1666 = vmatpush1.msra.mxu0 0.0
        %1667 = vmatprep.subr.mxu0 0.0
        %1668 = vmatpush1.msra.mxu0 0.0
        %1669 = vmatprep.subr.mxu0 0.0
        %1670 = vmatpush1.msra.mxu0 0.0
        %1671 = vmatprep.subr.mxu0 0.0
        %1672 = vmatpush1.msra.mxu0 0.0
        %1673 = vmatprep.mubr.f32.mxu0 0.0
        %1674 = vmatmul.mubr.f32.gmra.mrb[0].mxu0 %v1598
        %v1675 = vpop.f32.mrb[0].mxu0
        %v1676 = vadd.f32 0.0, %v1675
        %v1677 = vpop.f32.mrb[0].mxu0
        %1678 = vmatprep.mubr.f32.mxu0 0.0
        %1679 = vmatmul.mubr.f32.gmra.mrb[0].mxu0 %v1601
        %v1680 = vpop.f32.mrb[0].mxu0
        %v1681 = vadd.f32 0.0, %v1680
        %v1682 = vpop.f32.mrb[0].mxu0
        %1683 = vmatprep.mubr.f32.mxu0 0.0
        %1684 = vmatmul.mubr.f32.gmra.mrb[0].mxu0 %v1604
        %v1685 = vpop.f32.mrb[0].mxu0
        %v1686 = vadd.f32 0.0, %v1685
        %v1687 = vpop.f32.mrb[0].mxu0
        %1688 = vmatprep.mubr.f32.mxu0 0.0
        %1689 = vmatmul.mubr.f32.gmra.mrb[0].mxu0 %v1607
        %v1690 = vpop.f32.mrb[0].mxu0
        %v1691 = vadd.f32 0.0, %v1690
        %v1692 = vpop.f32.mrb[0].mxu0
        %1693 = vdwg.mxu0
        %1694 = vrot.lane.b32.xlu0 %v689, 64
        %v1695 = vpop.permute.xlu0 %1694
        %1696 = vrot.lane.b32.xlu0 %v691, 64
        %v1697 = vpop.permute.xlu0 %1696
        %1698 = vrot.lane.b32.xlu0 %v693, 64
        %v1699 = vpop.permute.xlu0 %1698
        %1700 = vrot.lane.b32.xlu0 %v695, 64
        %v1701 = vpop.permute.xlu0 %1700
        %v1707 = vsel %vm488, %v1468, 0
        %v1710 = vsel %vm488, %v1469, 0
        %v1713 = vsel %vm488, %v1470, 0
        %v1716 = vsel %vm488, %v1471, 0
        %1718 = vmatprep.subr.mxu0 0.0
        %1719 = vmatpush1.msra.mxu0 %v1695
        %1720 = vmatprep.subr.mxu0 0.0
        %1721 = vmatpush1.msra.mxu0 %v1697
        %1722 = vmatprep.subr.mxu0 0.0
        %1723 = vmatpush1.msra.mxu0 %v1699
        %1724 = vmatprep.subr.mxu0 0.0
        %1725 = vmatpush1.msra.mxu0 %v1701
        %1726 = vmatprep.subr.mxu0 0.0
        %1727 = vmatpush1.msra.mxu0 0.0
        %1728 = vmatprep.subr.mxu0 0.0
        %1729 = vmatpush1.msra.mxu0 0.0
        %1730 = vmatprep.subr.mxu0 0.0
        %1731 = vmatpush1.msra.mxu0 0.0
        %1732 = vmatprep.subr.mxu0 0.0
        %1733 = vmatpush1.msra.mxu0 0.0
        %1734 = vmatprep.subr.mxu0 0.0
        %1735 = vmatpush1.msra.mxu0 0.0
        %1736 = vmatprep.subr.mxu0 0.0
        %1737 = vmatpush1.msra.mxu0 0.0
        %1738 = vmatprep.subr.mxu0 0.0
        %1739 = vmatpush1.msra.mxu0 0.0
        %1740 = vmatprep.subr.mxu0 0.0
        %1741 = vmatpush1.msra.mxu0 0.0
        %1742 = vmatprep.subr.mxu0 0.0
        %1743 = vmatpush1.msra.mxu0 0.0
        %1744 = vmatprep.subr.mxu0 0.0
        %1745 = vmatpush1.msra.mxu0 0.0
        %1746 = vmatprep.subr.mxu0 0.0
        %1747 = vmatpush1.msra.mxu0 0.0
        %1748 = vmatprep.subr.mxu0 0.0
        %1749 = vmatpush1.msra.mxu0 0.0
        %1750 = vmatprep.subr.mxu0 0.0
        %1751 = vmatpush1.msra.mxu0 0.0
        %1752 = vmatprep.subr.mxu0 0.0
        %1753 = vmatpush1.msra.mxu0 0.0
        %1754 = vmatprep.subr.mxu0 0.0
        %1755 = vmatpush1.msra.mxu0 0.0
        %1756 = vmatprep.subr.mxu0 0.0
        %1757 = vmatpush1.msra.mxu0 0.0
        %1758 = vmatprep.subr.mxu0 0.0
        %1759 = vmatpush1.msra.mxu0 0.0
        %1760 = vmatprep.subr.mxu0 0.0
        %1761 = vmatpush1.msra.mxu0 0.0
        %1762 = vmatprep.subr.mxu0 0.0
        %1763 = vmatpush1.msra.mxu0 0.0
        %1764 = vmatprep.subr.mxu0 0.0
        %1765 = vmatpush1.msra.mxu0 0.0
        %1766 = vmatprep.subr.mxu0 0.0
        %1767 = vmatpush1.msra.mxu0 0.0
        %1768 = vmatprep.subr.mxu0 0.0
        %1769 = vmatpush1.msra.mxu0 0.0
        %1770 = vmatprep.subr.mxu0 0.0
        %1771 = vmatpush1.msra.mxu0 0.0
        %1772 = vmatprep.subr.mxu0 0.0
        %1773 = vmatpush1.msra.mxu0 0.0
        %1774 = vmatprep.subr.mxu0 0.0
        %1775 = vmatpush1.msra.mxu0 0.0
        %1776 = vmatprep.subr.mxu0 0.0
        %1777 = vmatpush1.msra.mxu0 0.0
        %1778 = vmatprep.subr.mxu0 0.0
        %1779 = vmatpush1.msra.mxu0 0.0
        %1780 = vmatprep.subr.mxu0 0.0
        %1781 = vmatpush1.msra.mxu0 0.0
        %1782 = vmatprep.mubr.f32.mxu0 0.0
        %1783 = vmatmul.mubr.f32.gmra.mrb[0].mxu0 %v1707
        %v1784 = vpop.f32.mrb[0].mxu0
        %v1785 = vadd.f32 0.0, %v1784
        %v1786 = vpop.f32.mrb[0].mxu0
        %1787 = vmatprep.mubr.f32.mxu0 0.0
        %1788 = vmatmul.mubr.f32.gmra.mrb[0].mxu0 %v1710
        %v1789 = vpop.f32.mrb[0].mxu0
        %v1790 = vadd.f32 0.0, %v1789
        %v1791 = vpop.f32.mrb[0].mxu0
        %1792 = vmatprep.mubr.f32.mxu0 0.0
        %1793 = vmatmul.mubr.f32.gmra.mrb[0].mxu0 %v1713
        %v1794 = vpop.f32.mrb[0].mxu0
        %v1795 = vadd.f32 0.0, %v1794
        %v1796 = vpop.f32.mrb[0].mxu0
        %1797 = vmatprep.mubr.f32.mxu0 0.0
        %1798 = vmatmul.mubr.f32.gmra.mrb[0].mxu0 %v1716
        %v1799 = vpop.f32.mrb[0].mxu0
        %v1800 = vadd.f32 0.0, %v1799
        %v1801 = vpop.f32.mrb[0].mxu0
        %1802 = vdwg.mxu0
        %1803 = vrot.lane.b32.xlu0 %v701, 64
        %v1804 = vpop.permute.xlu0 %1803
        %1805 = vrot.lane.b32.xlu0 %v703, 64
        %v1806 = vpop.permute.xlu0 %1805
        %1807 = vrot.lane.b32.xlu0 %v705, 64
        %v1808 = vpop.permute.xlu0 %1807
        %1809 = vrot.lane.b32.xlu0 %v707, 64
        %v1810 = vpop.permute.xlu0 %1809
        %v1816 = vsel %vm488, %v1472, 0
        %v1819 = vsel %vm488, %v1473, 0
        %v1822 = vsel %vm488, %v1474, 0
        %v1825 = vsel %vm488, %v1475, 0
        %1827 = vmatprep.subr.mxu0 0.0
        %1828 = vmatpush1.msra.mxu0 %v1804
        %1829 = vmatprep.subr.mxu0 0.0
        %1830 = vmatpush1.msra.mxu0 %v1806
        %1831 = vmatprep.subr.mxu0 0.0
        %1832 = vmatpush1.msra.mxu0 %v1808
        %1833 = vmatprep.subr.mxu0 0.0
        %1834 = vmatpush1.msra.mxu0 %v1810
        %1835 = vmatprep.subr.mxu0 0.0
        %1836 = vmatpush1.msra.mxu0 0.0
        %1837 = vmatprep.subr.mxu0 0.0
        %1838 = vmatpush1.msra.mxu0 0.0
        %1839 = vmatprep.subr.mxu0 0.0
        %1840 = vmatpush1.msra.mxu0 0.0
        %1841 = vmatprep.subr.mxu0 0.0
        %1842 = vmatpush1.msra.mxu0 0.0
        %1843 = vmatprep.subr.mxu0 0.0
        %1844 = vmatpush1.msra.mxu0 0.0
        %1845 = vmatprep.subr.mxu0 0.0
        %1846 = vmatpush1.msra.mxu0 0.0
        %1847 = vmatprep.subr.mxu0 0.0
        %1848 = vmatpush1.msra.mxu0 0.0
        %1849 = vmatprep.subr.mxu0 0.0
        %1850 = vmatpush1.msra.mxu0 0.0
        %1851 = vmatprep.subr.mxu0 0.0
        %1852 = vmatpush1.msra.mxu0 0.0
        %1853 = vmatprep.subr.mxu0 0.0
        %1854 = vmatpush1.msra.mxu0 0.0
        %1855 = vmatprep.subr.mxu0 0.0
        %1856 = vmatpush1.msra.mxu0 0.0
        %1857 = vmatprep.subr.mxu0 0.0
        %1858 = vmatpush1.msra.mxu0 0.0
        %1859 = vmatprep.subr.mxu0 0.0
        %1860 = vmatpush1.msra.mxu0 0.0
        %1861 = vmatprep.subr.mxu0 0.0
        %1862 = vmatpush1.msra.mxu0 0.0
        %1863 = vmatprep.subr.mxu0 0.0
        %1864 = vmatpush1.msra.mxu0 0.0
        %1865 = vmatprep.subr.mxu0 0.0
        %1866 = vmatpush1.msra.mxu0 0.0
        %1867 = vmatprep.subr.mxu0 0.0
        %1868 = vmatpush1.msra.mxu0 0.0
        %1869 = vmatprep.subr.mxu0 0.0
        %1870 = vmatpush1.msra.mxu0 0.0
        %1871 = vmatprep.subr.mxu0 0.0
        %1872 = vmatpush1.msra.mxu0 0.0
        %1873 = vmatprep.subr.mxu0 0.0
        %1874 = vmatpush1.msra.mxu0 0.0
        %1875 = vmatprep.subr.mxu0 0.0
        %1876 = vmatpush1.msra.mxu0 0.0
        %1877 = vmatprep.subr.mxu0 0.0
        %1878 = vmatpush1.msra.mxu0 0.0
        %1879 = vmatprep.subr.mxu0 0.0
        %1880 = vmatpush1.msra.mxu0 0.0
        %1881 = vmatprep.subr.mxu0 0.0
        %1882 = vmatpush1.msra.mxu0 0.0
        %1883 = vmatprep.subr.mxu0 0.0
        %1884 = vmatpush1.msra.mxu0 0.0
        %1885 = vmatprep.subr.mxu0 0.0
        %1886 = vmatpush1.msra.mxu0 0.0
        %1887 = vmatprep.subr.mxu0 0.0
        %1888 = vmatpush1.msra.mxu0 0.0
        %1889 = vmatprep.subr.mxu0 0.0
        %1890 = vmatpush1.msra.mxu0 0.0
        %1891 = vmatprep.mubr.f32.mxu0 0.0
        %1892 = vmatmul.mubr.f32.gmra.mrb[0].mxu0 %v1816
        %v1893 = vpop.f32.mrb[0].mxu0
        %v1894 = vadd.f32 0.0, %v1893
        %v1895 = vpop.f32.mrb[0].mxu0
        %1896 = vmatprep.mubr.f32.mxu0 0.0
        %1897 = vmatmul.mubr.f32.gmra.mrb[0].mxu0 %v1819
        %v1898 = vpop.f32.mrb[0].mxu0
        %v1899 = vadd.f32 0.0, %v1898
        %v1900 = vpop.f32.mrb[0].mxu0
        %1901 = vmatprep.mubr.f32.mxu0 0.0
        %1902 = vmatmul.mubr.f32.gmra.mrb[0].mxu0 %v1822
        %v1903 = vpop.f32.mrb[0].mxu0
        %v1904 = vadd.f32 0.0, %v1903
        %v1905 = vpop.f32.mrb[0].mxu0
        %1906 = vmatprep.mubr.f32.mxu0 0.0
        %1907 = vmatmul.mubr.f32.gmra.mrb[0].mxu0 %v1825
        %v1908 = vpop.f32.mrb[0].mxu0
        %v1909 = vadd.f32 0.0, %v1908
        %v1910 = vpop.f32.mrb[0].mxu0
        %1911 = vdwg.mxu0
        %1916 = vrot.lane.b32.xlu0 %v1676, 8
        %v1917 = vpop.permute.xlu0 %1916
        %1918 = vrot.lane.b32.xlu0 %v1681, 8
        %v1919 = vpop.permute.xlu0 %1918
        %1920 = vrot.lane.b32.xlu0 %v1686, 8
        %v1921 = vpop.permute.xlu0 %1920
        %1922 = vrot.lane.b32.xlu0 %v1691, 8
        %v1923 = vpop.permute.xlu0 %1922
        %1932 = vrot.lane.b32.xlu0 %v1785, 16
        %v1933 = vpop.permute.xlu0 %1932
        %1934 = vrot.lane.b32.xlu0 %v1790, 16
        %v1935 = vpop.permute.xlu0 %1934
        %1936 = vrot.lane.b32.xlu0 %v1795, 16
        %v1937 = vpop.permute.xlu0 %1936
        %1938 = vrot.lane.b32.xlu0 %v1800, 16
        %v1939 = vpop.permute.xlu0 %1938
        %1948 = vrot.lane.b32.xlu0 %v1894, 24
        %v1949 = vpop.permute.xlu0 %1948
        %1950 = vrot.lane.b32.xlu0 %v1899, 24
        %v1951 = vpop.permute.xlu0 %1950
        %1952 = vrot.lane.b32.xlu0 %v1904, 24
        %v1953 = vpop.permute.xlu0 %1952
        %1954 = vrot.lane.b32.xlu0 %v1909, 24
        %v1955 = vpop.permute.xlu0 %1954
        %v1960 = vsel %vm752, %v1567, %v1917
        %v1961 = vsel %vm752, %v1572, %v1919
        %v1962 = vsel %vm752, %v1577, %v1921
        %v1963 = vsel %vm752, %v1582, %v1923
        %vm1964 = vcmask 130048
        %v1965 = vsel %vm1964, %v1960, %v1933
        %v1966 = vsel %vm1964, %v1961, %v1935
        %v1967 = vsel %vm1964, %v1962, %v1937
        %v1968 = vsel %vm1964, %v1963, %v1939
        %vm1969 = vcmask 195584
        %v1970 = vsel %vm1969, %v1965, %v1949
        %v1971 = vsel %vm1969, %v1966, %v1951
        %v1972 = vsel %vm1969, %v1967, %v1953
        %v1973 = vsel %vm1969, %v1968, %v1955
        %v1974 = vld [vmem:[%s5] sm:$0xff]
        %v1975 = vld [vmem:[%s5 + $0x8] sm:$0xff]
        %v1976 = vld [vmem:[%s5 + $0x10] sm:$0xff]
        %v1977 = vld [vmem:[%s5 + $0x18] sm:$0xff]
        %v1978 = vld [vmem:[%s6] sm:$0x1]
        %v1980 = vlaneseq
        %v1981 = vshrl.u32 %v1980, 7
        %v1982 = vsub.s32 0, %v1981
        %v1983 = vrot.slane %v1978, %v1982
        %v1986 = vsel %vm488, %v1970, 0
        %v1989 = vsel %vm488, %v1971, 0
        %v1992 = vsel %vm488, %v1972, 0
        %v1995 = vsel %vm488, %v1973, 0
        %1997 = vmatprep.subr.mxu0 0.0
        %1998 = vmatpush1.msra.mxu0 %v1974
        %1999 = vmatprep.subr.mxu0 0.0
        %2000 = vmatpush1.msra.mxu0 %v1975
        %2001 = vmatprep.subr.mxu0 0.0
        %2002 = vmatpush1.msra.mxu0 %v1976
        %2003 = vmatprep.subr.mxu0 0.0
        %2004 = vmatpush1.msra.mxu0 %v1977
        %2005 = vmatprep.subr.mxu0 0.0
        %2006 = vmatpush1.msra.mxu0 0.0
        %2007 = vmatprep.subr.mxu0 0.0
        %2008 = vmatpush1.msra.mxu0 0.0
        %2009 = vmatprep.subr.mxu0 0.0
        %2010 = vmatpush1.msra.mxu0 0.0
        %2011 = vmatprep.subr.mxu0 0.0
        %2012 = vmatpush1.msra.mxu0 0.0
        %2013 = vmatprep.subr.mxu0 0.0
        %2014 = vmatpush1.msra.mxu0 0.0
        %2015 = vmatprep.subr.mxu0 0.0
        %2016 = vmatpush1.msra.mxu0 0.0
        %2017 = vmatprep.subr.mxu0 0.0
        %2018 = vmatpush1.msra.mxu0 0.0
        %2019 = vmatprep.subr.mxu0 0.0
        %2020 = vmatpush1.msra.mxu0 0.0
        %2021 = vmatprep.subr.mxu0 0.0
        %2022 = vmatpush1.msra.mxu0 0.0
        %2023 = vmatprep.subr.mxu0 0.0
        %2024 = vmatpush1.msra.mxu0 0.0
        %2025 = vmatprep.subr.mxu0 0.0
        %2026 = vmatpush1.msra.mxu0 0.0
        %2027 = vmatprep.subr.mxu0 0.0
        %2028 = vmatpush1.msra.mxu0 0.0
        %2029 = vmatprep.subr.mxu0 0.0
        %2030 = vmatpush1.msra.mxu0 0.0
        %2031 = vmatprep.subr.mxu0 0.0
        %2032 = vmatpush1.msra.mxu0 0.0
        %2033 = vmatprep.subr.mxu0 0.0
        %2034 = vmatpush1.msra.mxu0 0.0
        %2035 = vmatprep.subr.mxu0 0.0
        %2036 = vmatpush1.msra.mxu0 0.0
        %2037 = vmatprep.subr.mxu0 0.0
        %2038 = vmatpush1.msra.mxu0 0.0
        %2039 = vmatprep.subr.mxu0 0.0
        %2040 = vmatpush1.msra.mxu0 0.0
        %2041 = vmatprep.subr.mxu0 0.0
        %2042 = vmatpush1.msra.mxu0 0.0
        %2043 = vmatprep.subr.mxu0 0.0
        %2044 = vmatpush1.msra.mxu0 0.0
        %2045 = vmatprep.subr.mxu0 0.0
        %2046 = vmatpush1.msra.mxu0 0.0
        %2047 = vmatprep.subr.mxu0 0.0
        %2048 = vmatpush1.msra.mxu0 0.0
        %2049 = vmatprep.subr.mxu0 0.0
        %2050 = vmatpush1.msra.mxu0 0.0
        %2051 = vmatprep.subr.mxu0 0.0
        %2052 = vmatpush1.msra.mxu0 0.0
        %2053 = vmatprep.subr.mxu0 0.0
        %2054 = vmatpush1.msra.mxu0 0.0
        %2055 = vmatprep.subr.mxu0 0.0
        %2056 = vmatpush1.msra.mxu0 0.0
        %2057 = vmatprep.subr.mxu0 0.0
        %2058 = vmatpush1.msra.mxu0 0.0
        %2059 = vmatprep.subr.mxu0 0.0
        %2060 = vmatpush1.msra.mxu0 0.0
        %2061 = vmatprep.mubr.f32.mxu0 0.0
        %2062 = vmatmul.mubr.f32.gmra.mrb[0].mxu0 %v1986
        %v2063 = vpop.f32.mrb[0].mxu0
        %v2064 = vadd.f32 %v1983, %v2063
        %v2065 = vpop.f32.mrb[0].mxu0
        %2066 = vmatprep.mubr.f32.mxu0 0.0
        %2067 = vmatmul.mubr.f32.gmra.mrb[0].mxu0 %v1989
        %v2068 = vpop.f32.mrb[0].mxu0
        %v2069 = vadd.f32 %v1983, %v2068
        %v2070 = vpop.f32.mrb[0].mxu0
        %2071 = vmatprep.mubr.f32.mxu0 0.0
        %2072 = vmatmul.mubr.f32.gmra.mrb[0].mxu0 %v1992
        %v2073 = vpop.f32.mrb[0].mxu0
        %v2074 = vadd.f32 %v1983, %v2073
        %v2075 = vpop.f32.mrb[0].mxu0
        %2076 = vmatprep.mubr.f32.mxu0 0.0
        %2077 = vmatmul.mubr.f32.gmra.mrb[0].mxu0 %v1995
        %v2078 = vpop.f32.mrb[0].mxu0
        %v2079 = vadd.f32 %v1983, %v2078
        %v2080 = vpop.f32.mrb[0].mxu0
        %2081 = vdwg.mxu0
        %2082 = vst.msk [vmem:[%s466] sm:$0xff] %vm488, %v2064
        %2083 = vst.msk [vmem:[%s466 + $0x8] sm:$0xff] %vm488, %v2069
        %2084 = vst.msk [vmem:[%s466 + $0x10] sm:$0xff] %vm488, %v2074
        %2085 = vst.msk [vmem:[%s466 + $0x18] sm:$0xff] %vm488, %v2079
        %s2086 = sand.u32 %s292, 1
        %s2087 = scalar_lea.sflag [#allocation4], %s2086
        %s2088 = sand.u32 %s292, 1
        %s2089 = smul.addr %s2088, 32
        %s2090 = scalar_lea.vmem [#allocation7], %s2089
        // Predicated region
        $region69: #{tpu_custom_call.1} parent=59 // pred_check
          %p2091 = pneg %p302
        $region70: #{tpu_custom_call.1} parent=59 // pred_check_branch
          %2093 = sbr.rel (%p2091) target = $region72
        $region71: #{tpu_custom_call.1} parent=59 // pred_region
          %s2094 = smul.u32 4, %s34
          %s2096 = ssub.s32 512, 512
          %2097 = vsyncadd %s2087, %s2096
          %s2098 = sadd.s32 %s35, %s2094
          %s2099 = smul.addr %s33, 8
          %s2100 = sadd.s32 %s2098, %s2099
          %s2101 = smul.addr %s2100, 128
          %s2102 = scalar_lea.hbm %s10, %s2101
          %s2103 = sshll.u32 %s2090, 4
          %s2104 = int_to_ptr.vmem [resolvable:$true] %s2103
          %2109 = dma.vmem_to_hbm [thread:$0]  %s2104, 512, %s2102, %s2087, 128, 128, 8
        $region72: #{tpu_custom_call.1} parent=59 // pred_fallthru
          _
      $region60: #{tpu_custom_call.1} parent=5 // pred_fallthru
        _
      %p2110 = scmp.le.s32.totalorder 2, %s23
      // Predicated region
      $region73: #{tpu_custom_call.1} parent=5 // pred_check
        %p2111 = pneg %p2110
      $region74: #{tpu_custom_call.1} parent=5 // pred_check_branch
        %2113 = sbr.rel (%p2111) target = $region76
      $region75: #{tpu_custom_call.1} parent=5 // pred_region
        %s2114 = ssub.s32 %s23, 2
        // Predicated region
        $region77: #{tpu_custom_call.1} parent=75 // pred_check
          %p2115 = pneg %p308
        $region78: #{tpu_custom_call.1} parent=75 // pred_check_branch
          %2117 = sbr.rel (%p2115) target = $region80
        $region79: #{tpu_custom_call.1} parent=75 // pred_region
          %s2118 = sand.u32 %s293, 1
          %s2119 = scalar_lea.sflag [#allocation4], %s2118
          %s2120 = sand.u32 %s293, 1
          %s2121 = smul.addr %s2120, 32
          %s2122 = scalar_lea.vmem [#allocation7], %s2121
          %2123 = dma.done %s2119, 512
        $region80: #{tpu_custom_call.1} parent=75 // pred_fallthru
          _
      $region76: #{tpu_custom_call.1} parent=5 // pred_fallthru
        _
    $region6: #{tpu_custom_call.1} parent=1 // loop_footer
      %s27 = sadd.s32 1, %s23
    $region7: #{tpu_custom_call.1} parent=1 // loop_footer_branch
      %22 = sbr.rel target = $region3
    $region8: #{tpu_custom_call.1} parent=1 // loop_exit
      _
    %2124 = vsyncpa [#allocation3], 1
    %s2125 = scalar_lea.sflag [#allocation3], 1
    %2126 = vsyncpa %s2125, 1
    %2127 = vsyncpa [#allocation6], 1
    %2128 = vsyncpa [#allocation4], 1
    %s2129 = scalar_lea.sflag [#allocation4], 1
    %2130 = vsyncpa %s2129, 1

</llo_original>
